<compile_context>
chip_gen: v5e
topology: v5e:2x2
jax: 0.10.0
libtpu: 0.0.40
codegen_flags: <defaults>
</compile_context>

<pallas_src>
import functools
import math

import jax
import jax.numpy as jnp
from jax import lax
from jax.experimental import pallas as pl
from jax.experimental.pallas import tpu as pltpu


def _round_up(x: int, m: int) -> int:
    return ((x + m - 1) // m) * m


def _pad128(c: int) -> int:
    return _round_up(c, 128)


def _vmem_capacity_bytes():
    try:
        info = pltpu.get_tpu_info()
        for name in ("vmem_capacity_bytes", "vmem_bytes", "vmem_size_bytes"):
            v = getattr(info, name, None)
            if v is not None:
                return int(v)
    except Exception:
        pass
    return None


def _vmem_params():
    """Generation-aware (row-tile cap, tiling budget, vmem_limit_bytes)."""
    cap = _vmem_capacity_bytes()
    if cap is not None and cap >= 96 * 1024 * 1024:
        # v5e / v6e: 128 MiB physical VMEM -> bigger tiles, fewer grid steps.
        return 4096, 20 * 1024 * 1024, 64 * 1024 * 1024
    # v7x (64 MiB physical / 32 MiB scoped) or unknown: stay conservative.
    return 1024, 8 * 1024 * 1024, 32 * 1024 * 1024


def _pick_tile_n(n_true, cin, couts, itemsize, budget_bytes, tile_cap, pack):
    """Row-tile size under a lane-padding-aware VMEM budget (128-lane padded widths,
    double-buffered streamed operands, resident weights/scales + accumulators)."""
    L = len(couts)
    c_scr = _pad128(max(couts[:-1])) if L > 1 else 128
    widest = _pad128(max(couts + [cin]))
    per_row = (2 * _pad128(cin) * itemsize      # x tile (double-buffered, lane-padded)
               + c_scr * itemsize               # bf16 activation scratch (stats kernel)
               + 2 * _pad128(couts[-1]) * 4     # output tile (double-buffered, f32)
               + 4 * widest * 4)                # live f32 temporaries (y, y*y, epilogue)
    fixed = 0
    prev = cin
    for c in couts:
        # stats-call weight + apply-call (possibly lane-packed) weight, double-buffered
        fixed += 2 * _round_up(prev, 8) * _pad128(c) * itemsize
        fixed += 2 * _round_up(pack * prev, 8) * _pad128(pack * c) * itemsize
        # gamma/beta/scale/shift blocks (incl. packed copies), double-buffered
        fixed += 6 * 2 * 8 * _pad128(pack * c) * 4
        # per-channel sum / sumsq accumulators
        fixed += 2 * 8 * _pad128(c) * 4
        prev = c
    tile = tile_cap
    while tile > 128 and fixed + tile * per_row > budget_bytes:
        tile //= 2
    if n_true <= tile:
        tile = max(128, _round_up(n_true, 128))
    return tile


def _fc_stats_kernel(*refs, num_layers, relu_flags, eps, n_valid, tile_n, n_tiles,
                     cins, couts):
    """Pass p accumulates layer p's batch statistics; layers < p are replayed with their
    already-folded BN, layers > p cost nothing (gated)."""
    L = num_layers
    x_ref = refs[0]
    w_refs = refs[1:1 + L]
    g_refs = refs[1 + L:1 + 2 * L]
    b_refs = refs[1 + 2 * L:1 + 3 * L]
    scale_refs = refs[1 + 3 * L:1 + 4 * L]     # outputs: folded BN scale, (1, cout_l)
    shift_refs = refs[1 + 4 * L:1 + 5 * L]     # outputs: folded BN shift, (1, cout_l)
    h_ref = refs[1 + 5 * L]                    # bf16 activation carry (VMEM scratch)
    acc_refs = refs[2 + 5 * L:]                # sum_0, sq_0, sum_1, sq_1, ...

    p = pl.program_id(0)                       # which layer's statistics this pass makes
    i = pl.program_id(1)                       # row-tile index

    # Valid-row mask (handles N padding of the last tile).  Statistics are accumulated
    # with exact f32 VPU adds, avoiding bf16 truncation of y / y^2.
    rows = i * tile_n + lax.broadcasted_iota(jnp.int32, (tile_n, 1), 0)
    rmask = (rows < n_valid).astype(jnp.float32)
    inv_count = 1.0 / float(n_valid)

    for l in range(L):
        sum_ref = acc_refs[2 * l]
        sq_ref = acc_refs[2 * l + 1]

        def _load_h(l=l):
            if l == 0:
                return x_ref[...]
            return h_ref[:, :cins[l]]

        @pl.when(p == l)
        def _stats(l=l, sum_ref=sum_ref, sq_ref=sq_ref):
            h = _load_h(l)
            w = w_refs[l][...]
            # 1x1 conv == row-wise matmul on the MXU.  The conv bias (zero-init in the
            # reference) is dropped: train-mode BN subtracts the batch mean, so any
            # per-channel bias cancels exactly.
            y = jnp.dot(h.astype(w.dtype), w, preferred_element_type=jnp.float32)
            ym = y * rmask
            s = jnp.sum(ym, axis=0, keepdims=True)
            sq = jnp.sum(ym * y, axis=0, keepdims=True)

            @pl.when(i == 0)
            def _():
                sum_ref[...] = s
                sq_ref[...] = sq

            @pl.when(i > 0)
            def _():
                sum_ref[...] += s
                sq_ref[...] += sq

            @pl.when(i == n_tiles - 1)
            def _():
                mean = sum_ref[...] * inv_count
                # TODO(synk): E[y^2]-E[y]^2 in f32; a two-pass variance would need one
                # more recompute pass per layer (not worth it at these channel widths).
                var = sq_ref[...] * inv_count - mean * mean
                inv_std = lax.rsqrt(jnp.maximum(var, 0.0) + eps)
                scale = g_refs[l][...] * inv_std
                scale_refs[l][...] = scale
                shift_refs[l][...] = b_refs[l][...] - mean * scale

        # Passes p > l: this layer's statistics are final, so run its forward (BN folded
        # to one FMA + optional ReLU) to feed the next layer.  Fully gated, so layers
        # beyond the current pass cost nothing.  The last layer never feeds anything.
        if l < L - 1:
            @pl.when(p > l)
            def _forward(l=l):
                h = _load_h(l)
                w = w_refs[l][...]
                y = jnp.dot(h.astype(w.dtype), w, preferred_element_type=jnp.float32)
                hn = y * scale_refs[l][...] + shift_refs[l][...]
                if relu_flags[l]:
                    hn = jnp.maximum(hn, 0.0)
                # Carry the activation in matmul dtype (bf16): halves live bytes and
                # avoids a redundant cast before the next MXU dot.
                h_ref[:, :couts[l]] = hn.astype(h_ref.dtype)


def _fc_apply_kernel(*refs, num_layers, relu_flags):
    """Replay the chain with folded BN scale/shift and write the output tile.  The same
    body serves both the plain and the lane-packed layouts (packing is wrapper-level)."""
    L = num_layers
    x_ref = refs[0]
    w_refs = refs[1:1 + L]
    scale_refs = refs[1 + L:1 + 2 * L]
    shift_refs = refs[1 + 2 * L:1 + 3 * L]
    o_ref = refs[1 + 3 * L]

    h = x_ref[...]
    for l in range(L):
        w = w_refs[l][...]
        y = jnp.dot(h.astype(w.dtype), w, preferred_element_type=jnp.float32)
        h = y * scale_refs[l][...] + shift_refs[l][...]
        if relu_flags[l]:
            h = jnp.maximum(h, 0.0)
        if l < L - 1:
            h = h.astype(w.dtype)
    o_ref[...] = h.astype(o_ref.dtype)


def fc_forward(x, layers, *, eps=1e-5, matmul_dtype=jnp.bfloat16):
    """x: (B, D1, D2, Cin) channels-last.  layers: list of (W(cin,cout), gamma, beta, relu)."""
    b, d1, d2, cin = x.shape
    n_true = b * d1 * d2
    L = len(layers)
    cins = [w.shape[0] for (w, _, _, _) in layers]
    couts = [w.shape[1] for (w, _, _, _) in layers]
    relu_flags = tuple(bool(r) for (_, _, _, r) in layers)
    assert cins[0] == cin

    # Lane-packing factor for the apply pass: pack 8 rows side-by-side in lanes when all
    # channel widths are small, so loads, matmuls and the output store are lane-dense.
    pack = 8 if max([cin] + couts) <= 64 else 1

    itemsize = jnp.dtype(matmul_dtype).itemsize
    tile_cap, budget, vmem_limit = _vmem_params()
    tile_n = _pick_tile_n(n_true, cin, couts, itemsize, budget, tile_cap, pack)
    n_pad = _round_up(n_true, tile_n)
    n_tiles = n_pad // tile_n

    x2 = x.reshape(n_true, cin)
    if n_pad != n_true:
        x2 = jnp.pad(x2, ((0, n_pad - n_true), (0, 0)))
    x2 = x2.astype(matmul_dtype)

    ws_f32 = [w for (w, _, _, _) in layers]
    ws = [w.astype(matmul_dtype) for w in ws_f32]
    gs = [g for (_, g, _, _) in layers]
    bs = [bt for (_, _, bt, _) in layers]

    # ---------------- pass chain 1: per-layer batch statistics -> folded BN ------------
    const2 = lambda shape: pl.BlockSpec(shape, lambda p, i: (0, 0))
    stats_in_specs = ([pl.BlockSpec((tile_n, cin), lambda p, i: (i, 0))]
                      + [const2(w.shape) for w in ws]
                      + [const2(g.shape) for g in gs]
                      + [const2(bt.shape) for bt in bs])
    stats_out_specs = [const2((1, c)) for c in couts] * 2
    stats_out_shape = [jax.ShapeDtypeStruct((1, c), jnp.float32) for c in couts] * 2

    c_scr = _pad128(max(couts[:-1])) if L > 1 else 128
    h_scr_rows = tile_n if L > 1 else 8
    scratch = [pltpu.VMEM((h_scr_rows, c_scr), matmul_dtype)]
    for c in couts:
        scratch += [pltpu.VMEM((1, c), jnp.float32),   # per-channel sum
                    pltpu.VMEM((1, c), jnp.float32)]   # per-channel sum of squares

    stats_kernel = functools.partial(
        _fc_stats_kernel, num_layers=L, relu_flags=relu_flags, eps=eps,
        n_valid=n_true, tile_n=tile_n, n_tiles=n_tiles,
        cins=tuple(cins), couts=tuple(couts))

    stats_out = pl.pallas_call(
        stats_kernel,
        out_shape=stats_out_shape,
        grid_spec=pltpu.PrefetchScalarGridSpec(
            num_scalar_prefetch=0,
            grid=(L, n_tiles),
            in_specs=stats_in_specs,
            out_specs=stats_out_specs,
            scratch_shapes=scratch),
        compiler_params=pltpu.CompilerParams(
            # Both axes carry sequential dependencies (layer l's stats feed layer l+1's
            # recompute; cross-tile accumulation into VMEM scratch).
            dimension_semantics=("arbitrary", "arbitrary"),
            vmem_limit_bytes=vmem_limit),
    )(x2, *ws, *gs, *bs)
    scales, shifts = list(stats_out[:L]), list(stats_out[L:])

    # ---------------- pass 2: apply the folded chain, stream the output ----------------
    cout_last = couts[-1]
    if pack > 1:
        # Byte-identical lane-packed views / operands (all built outside the kernel):
        #   x:(n,cin) -> (n/8, 8*cin); W -> block-diag kron(I8, W); scale/shift tiled x8.
        x_apply = x2.reshape(n_pad // pack, pack * cin)
        eye = jnp.eye(pack, dtype=jnp.float32)
        ws_apply = [jnp.kron(eye, w).astype(matmul_dtype) for w in ws_f32]
        scales_apply = [jnp.tile(s, (1, pack)) for s in scales]
        shifts_apply = [jnp.tile(s, (1, pack)) for s in shifts]
    else:
        x_apply, ws_apply, scales_apply, shifts_apply = x2, ws, scales, shifts

    rows_t = tile_n // pack
    in_cols = pack * cin
    out_cols = pack * cout_last

    const1 = lambda shape: pl.BlockSpec(shape, lambda i: (0, 0))
    apply_in_specs = ([pl.BlockSpec((rows_t, in_cols), lambda i: (i, 0))]
                      + [const1(w.shape) for w in ws_apply]
                      + [const1(s.shape) for s in scales_apply]
                      + [const1(s.shape) for s in shifts_apply])
    out_shape = jax.ShapeDtypeStruct((n_pad // pack, out_cols), jnp.float32)
    out_spec = pl.BlockSpec((rows_t, out_cols), lambda i: (i, 0))

    apply_kernel = functools.partial(
        _fc_apply_kernel, num_layers=L, relu_flags=relu_flags)

    out = pl.pallas_call(
        apply_kernel,
        out_shape=out_shape,
        grid_spec=pltpu.PrefetchScalarGridSpec(
            num_scalar_prefetch=0,
            grid=(n_tiles,),
            in_specs=apply_in_specs,
            out_specs=out_spec),
        compiler_params=pltpu.CompilerParams(
            # Row tiles are independent here -> "parallel" lets v7x split the apply pass
            # across both TensorCores (no effect on single-TC v5e/v6e).
            dimension_semantics=("parallel",),
            vmem_limit_bytes=vmem_limit),
    )(x_apply, *ws_apply, *scales_apply, *shifts_apply)

    out = out.reshape(n_pad, cout_last)
    return out[:n_true].reshape(b, d1, d2, cout_last)


def _xavier_uniform(key, cin, cout):
    # torch.nn.init.xavier_uniform_ on a Conv2d (cout, cin, 1, 1): fan_in=cin, fan_out=cout.
    # Stored transposed as (cin, cout) for x @ W.
    limit = math.sqrt(6.0 / (cin + cout))
    return jax.random.uniform(key, (cin, cout), jnp.float32, -limit, limit)


class FCPallas:
    """Mirror of the PyTorch FC module: a chain of (1x1 conv -> BN(train) -> optional ReLU)."""

    def __init__(self, input_dims, units, activations, key, *, eps=1e-5,
                 matmul_dtype=jnp.bfloat16):
        if isinstance(units, int):
            units, input_dims, activations = [units], [input_dims], [activations]
        else:
            units, input_dims, activations = list(units), list(input_dims), list(activations)
        self.eps = eps
        self.matmul_dtype = matmul_dtype
        self.layers = []
        for cin, cout, act in zip(input_dims, units, activations):
            key, wk = jax.random.split(key)
            w = _xavier_uniform(wk, cin, cout)
            gamma = jnp.ones((1, cout), jnp.float32)   # BN weight init
            beta = jnp.zeros((1, cout), jnp.float32)   # BN bias init
            # Conv bias (use_bias=True, zero-init in the reference) is intentionally
            # dropped: it is cancelled exactly by train-mode BatchNorm.
            self.layers.append((w, gamma, beta, act is not None))

    def __call__(self, x):
        return fc_forward(x, self.layers, eps=self.eps, matmul_dtype=self.matmul_dtype)


def _reference_forward(x, layers, eps, matmul_dtype):
    """Plain-JAX reference with identical dtype policy (bf16 matmul inputs, f32 BN)."""
    b, d1, d2, c = x.shape
    h = x.reshape(b * d1 * d2, c)
    for w, gamma, beta, relu in layers:
        y = jnp.dot(h.astype(matmul_dtype), w.astype(matmul_dtype),
                    preferred_element_type=jnp.float32)
        mean = jnp.mean(y, axis=0, keepdims=True)
        var = jnp.mean((y - mean) ** 2, axis=0, keepdims=True)
        h = (y - mean) * lax.rsqrt(var + eps) * gamma + beta
        if relu:
            h = jnp.maximum(h, 0.0)
    return h.reshape(b, d1, d2, h.shape[-1])


if __name__ == "__main__":
    key = jax.random.PRNGKey(0)
    key, pk = jax.random.split(key)

    # Two FC layers: 4 -> 32 (ReLU) -> 16 (no activation), matching the module chain.
    model = FCPallas(input_dims=(4, 32), units=(32, 16),
                     activations=("relu", None), key=pk)

    # Case 1: tiny shape (single row tile).  batch=2, D1=16, D2=8, channels=4.
    key, xk = jax.random.split(key)
    x1 = jax.random.normal(xk, (2, 16, 8, 4), jnp.float32)
    out1 = jax.block_until_ready(model(x1))
    assert out1.shape == (2, 16, 8, 16), out1.shape
    assert bool(jnp.all(jnp.isfinite(out1)))
    ref1 = jax.block_until_ready(
        _reference_forward(x1, model.layers, model.eps, model.matmul_dtype))
    err1 = float(jnp.max(jnp.abs(out1 - ref1)))
    assert err1 < 2e-2, f"case1 max abs error vs reference: {err1}"

    # Case 2: enough rows to force multiple row tiles + a padded last tile, exercising
    # the cross-tile statistics accumulation and the valid-row mask.
    key, xk = jax.random.split(key)
    x2 = jax.random.normal(xk, (2, 56, 56, 4), jnp.float32)
    out2 = jax.block_until_ready(model(x2))
    assert out2.shape == (2, 56, 56, 16), out2.shape
    assert bool(jnp.all(jnp.isfinite(out2)))
    ref2 = jax.block_until_ready(
        _reference_forward(x2, model.layers, model.eps, model.matmul_dtype))
    err2 = float(jnp.max(jnp.abs(out2 - ref2)))
    assert err2 < 2e-2, f"case2 max abs error vs reference: {err2}"

    print("KERNEL_OK")
</pallas_src>

<mosaic_0001>
module attributes {stable_mosaic.version = 11 : i64} {
  func.func @_fc_stats_kernel(%arg0: i32, %arg1: i32, %arg2: memref<256x4xbf16, #tpu.memory_space<vmem>>, %arg3: memref<4x32xbf16, #tpu.memory_space<vmem>>, %arg4: memref<32x16xbf16, #tpu.memory_space<vmem>>, %arg5: memref<1x32xf32, #tpu.memory_space<vmem>>, %arg6: memref<1x16xf32, #tpu.memory_space<vmem>>, %arg7: memref<1x32xf32, #tpu.memory_space<vmem>>, %arg8: memref<1x16xf32, #tpu.memory_space<vmem>>, %arg9: memref<1x32xf32, #tpu.memory_space<vmem>>, %arg10: memref<1x16xf32, #tpu.memory_space<vmem>>, %arg11: memref<1x32xf32, #tpu.memory_space<vmem>>, %arg12: memref<1x16xf32, #tpu.memory_space<vmem>>, %arg13: memref<256x128xbf16, #tpu.memory_space<vmem>>, %arg14: memref<1x32xf32, #tpu.memory_space<vmem>>, %arg15: memref<1x32xf32, #tpu.memory_space<vmem>>, %arg16: memref<1x16xf32, #tpu.memory_space<vmem>>, %arg17: memref<1x16xf32, #tpu.memory_space<vmem>>) attributes {dimension_semantics = [#tpu.dimension_semantics<arbitrary>, #tpu.dimension_semantics<arbitrary>], iteration_bounds = array<i64: 2, 1>, scalar_prefetch = 0 : i64, scratch_operands = 5 : i64, tpu.core_type = #tpu.core_type<tc>, window_params = [{transform_indices = @transform_0, window_bounds = array<i64: 256, 4>}, {pipeline_mode = #tpu.pipeline_mode<synchronous>, transform_indices = @transform_1, window_bounds = array<i64: 4, 32>}, {pipeline_mode = #tpu.pipeline_mode<synchronous>, transform_indices = @transform_2, window_bounds = array<i64: 32, 16>}, {pipeline_mode = #tpu.pipeline_mode<synchronous>, transform_indices = @transform_3, window_bounds = array<i64: 1, 32>}, {pipeline_mode = #tpu.pipeline_mode<synchronous>, transform_indices = @transform_4, window_bounds = array<i64: 1, 16>}, {pipeline_mode = #tpu.pipeline_mode<synchronous>, transform_indices = @transform_5, window_bounds = array<i64: 1, 32>}, {pipeline_mode = #tpu.pipeline_mode<synchronous>, transform_indices = @transform_6, window_bounds = array<i64: 1, 16>}, {pipeline_mode = #tpu.pipeline_mode<synchronous>, transform_indices = @transform_7, window_bounds = array<i64: 1, 32>}, {pipeline_mode = #tpu.pipeline_mode<synchronous>, transform_indices = @transform_8, window_bounds = array<i64: 1, 16>}, {pipeline_mode = #tpu.pipeline_mode<synchronous>, transform_indices = @transform_9, window_bounds = array<i64: 1, 32>}, {pipeline_mode = #tpu.pipeline_mode<synchronous>, transform_indices = @transform_10, window_bounds = array<i64: 1, 16>}]} {
    %c256_i32 = arith.constant 256 : i32
    %0 = arith.muli %arg1, %c256_i32 : i32
    %1 = tpu.iota {dimensions = array<i32: 0>} : vector<256x1xi32>
    %2 = vector.broadcast %0 : i32 to vector<256x1xi32>
    %3 = arith.addi %2, %1 : vector<256x1xi32>
    %c256_i32_0 = arith.constant 256 : i32
    %4 = vector.broadcast %c256_i32_0 : i32 to vector<256x1xi32>
    %5 = arith.cmpi slt, %3, %4 : vector<256x1xi32>
    %6 = arith.extui %5 : vector<256x1xi1> to vector<256x1xi32>
    %7 = arith.sitofp %6 : vector<256x1xi32> to vector<256x1xf32>
    %c0_i32 = arith.constant 0 : i32
    %8 = arith.cmpi eq, %arg0, %c0_i32 : i32
    %9 = arith.extui %8 : i1 to i32
    %c0_i32_1 = arith.constant 0 : i32
    %10 = arith.cmpi ne, %9, %c0_i32_1 : i32
    scf.if %10 {
      %c0 = arith.constant 0 : index
      %c0_5 = arith.constant 0 : index
      %17 = vector.load %arg2[%c0, %c0_5] : memref<256x4xbf16, #tpu.memory_space<vmem>>, vector<256x4xbf16>
      %c0_6 = arith.constant 0 : index
      %c0_7 = arith.constant 0 : index
      %18 = vector.load %arg3[%c0_6, %c0_7] : memref<4x32xbf16, #tpu.memory_space<vmem>>, vector<4x32xbf16>
      %cst = arith.constant dense<0.000000e+00> : vector<256x32xf32>
      %19 = tpu.matmul %17, %18, %cst {dimension_numbers = #tpu.dot_dimension_numbers<[1], [0], [0], [1], [0, 0, 1, 1], [], []>} : vector<256x4xbf16>, vector<4x32xbf16>, vector<256x32xf32> -> vector<256x32xf32>
      %20 = vector.broadcast %7 : vector<256x1xf32> to vector<256x32xf32>
      %21 = arith.mulf %19, %20 : vector<256x32xf32>
      %cst_8 = arith.constant dense<0.000000e+00> : vector<32xf32>
      %22 = vector.multi_reduction <add>, %21, %cst_8 [0] : vector<256x32xf32> to vector<32xf32>
      %23 = vector.shape_cast %22 : vector<32xf32> to vector<1x32xf32>
      %24 = arith.mulf %21, %19 : vector<256x32xf32>
      %cst_9 = arith.constant dense<0.000000e+00> : vector<32xf32>
      %25 = vector.multi_reduction <add>, %24, %cst_9 [0] : vector<256x32xf32> to vector<32xf32>
      %26 = vector.shape_cast %25 : vector<32xf32> to vector<1x32xf32>
      %c0_i32_10 = arith.constant 0 : i32
      %27 = arith.cmpi eq, %arg1, %c0_i32_10 : i32
      %28 = arith.extui %27 : i1 to i32
      %c0_i32_11 = arith.constant 0 : i32
      %29 = arith.cmpi ne, %28, %c0_i32_11 : i32
      scf.if %29 {
        %c0_16 = arith.constant 0 : index
        %c0_17 = arith.constant 0 : index
        %36 = vector.load %arg14[%c0_16, %c0_17] : memref<1x32xf32, #tpu.memory_space<vmem>>, vector<1x32xf32>
        tpu.vector_store %arg14[%c0_16, %c0_17], %23 {strides = array<i32>} : memref<1x32xf32, #tpu.memory_space<vmem>>, vector<1x32xf32>,
        %c0_18 = arith.constant 0 : index
        %c0_19 = arith.constant 0 : index
        %37 = vector.load %arg15[%c0_18, %c0_19] : memref<1x32xf32, #tpu.memory_space<vmem>>, vector<1x32xf32>
        tpu.vector_store %arg15[%c0_18, %c0_19], %26 {strides = array<i32>} : memref<1x32xf32, #tpu.memory_space<vmem>>, vector<1x32xf32>,
      } else {
      }
      %c0_i32_12 = arith.constant 0 : i32
      %30 = arith.cmpi sgt, %arg1, %c0_i32_12 : i32
      %31 = arith.extui %30 : i1 to i32
      %c0_i32_13 = arith.constant 0 : i32
      %32 = arith.cmpi ne, %31, %c0_i32_13 : i32
      scf.if %32 {
        %c0_16 = arith.constant 0 : index
        %c0_17 = arith.constant 0 : index
        %36 = vector.load %arg14[%c0_16, %c0_17] : memref<1x32xf32, #tpu.memory_space<vmem>>, vector<1x32xf32>
        %37 = arith.addf %36, %23 : vector<1x32xf32>
        %c0_18 = arith.constant 0 : index
        %c0_19 = arith.constant 0 : index
        %38 = vector.load %arg14[%c0_18, %c0_19] : memref<1x32xf32, #tpu.memory_space<vmem>>, vector<1x32xf32>
        tpu.vector_store %arg14[%c0_18, %c0_19], %37 {strides = array<i32>} : memref<1x32xf32, #tpu.memory_space<vmem>>, vector<1x32xf32>,
        %c0_20 = arith.constant 0 : index
        %c0_21 = arith.constant 0 : index
        %39 = vector.load %arg15[%c0_20, %c0_21] : memref<1x32xf32, #tpu.memory_space<vmem>>, vector<1x32xf32>
        %40 = arith.addf %39, %26 : vector<1x32xf32>
        %c0_22 = arith.constant 0 : index
        %c0_23 = arith.constant 0 : index
        %41 = vector.load %arg15[%c0_22, %c0_23] : memref<1x32xf32, #tpu.memory_space<vmem>>, vector<1x32xf32>
        tpu.vector_store %arg15[%c0_22, %c0_23], %40 {strides = array<i32>} : memref<1x32xf32, #tpu.memory_space<vmem>>, vector<1x32xf32>,
      } else {
      }
      %c0_i32_14 = arith.constant 0 : i32
      %33 = arith.cmpi eq, %arg1, %c0_i32_14 : i32
      %34 = arith.extui %33 : i1 to i32
      %c0_i32_15 = arith.constant 0 : i32
      %35 = arith.cmpi ne, %34, %c0_i32_15 : i32
      scf.if %35 {
        %c0_16 = arith.constant 0 : index
        %c0_17 = arith.constant 0 : index
        %36 = vector.load %arg14[%c0_16, %c0_17] : memref<1x32xf32, #tpu.memory_space<vmem>>, vector<1x32xf32>
        %cst_18 = arith.constant 3.906250e-03 : f32
        %37 = vector.broadcast %cst_18 : f32 to vector<1x32xf32>
        %38 = arith.mulf %36, %37 : vector<1x32xf32>
        %c0_19 = arith.constant 0 : index
        %c0_20 = arith.constant 0 : index
        %39 = vector.load %arg15[%c0_19, %c0_20] : memref<1x32xf32, #tpu.memory_space<vmem>>, vector<1x32xf32>
        %cst_21 = arith.constant 3.906250e-03 : f32
        %40 = vector.broadcast %cst_21 : f32 to vector<1x32xf32>
        %41 = arith.mulf %39, %40 : vector<1x32xf32>
        %42 = arith.mulf %38, %38 : vector<1x32xf32>
        %43 = arith.subf %41, %42 : vector<1x32xf32>
        %cst_22 = arith.constant 0.000000e+00 : f32
        %44 = vector.broadcast %cst_22 : f32 to vector<1x32xf32>
        %45 = arith.maximumf %43, %44 : vector<1x32xf32>
        %cst_23 = arith.constant 9.99999974E-6 : f32
        %46 = vector.broadcast %cst_23 : f32 to vector<1x32xf32>
        %47 = arith.addf %45, %46 : vector<1x32xf32>
        %48 = math.rsqrt %47 : vector<1x32xf32>
        %c0_24 = arith.constant 0 : index
        %c0_25 = arith.constant 0 : index
        %49 = vector.load %arg5[%c0_24, %c0_25] : memref<1x32xf32, #tpu.memory_space<vmem>>, vector<1x32xf32>
        %50 = arith.mulf %49, %48 : vector<1x32xf32>
        %c0_26 = arith.constant 0 : index
        %c0_27 = arith.constant 0 : index
        %51 = vector.load %arg9[%c0_26, %c0_27] : memref<1x32xf32, #tpu.memory_space<vmem>>, vector<1x32xf32>
        tpu.vector_store %arg9[%c0_26, %c0_27], %50 {strides = array<i32>} : memref<1x32xf32, #tpu.memory_space<vmem>>, vector<1x32xf32>,
        %c0_28 = arith.constant 0 : index
        %c0_29 = arith.constant 0 : index
        %52 = vector.load %arg7[%c0_28, %c0_29] : memref<1x32xf32, #tpu.memory_space<vmem>>, vector<1x32xf32>
        %53 = arith.mulf %38, %50 : vector<1x32xf32>
        %54 = arith.subf %52, %53 : vector<1x32xf32>
        %c0_30 = arith.constant 0 : index
        %c0_31 = arith.constant 0 : index
        %55 = vector.load %arg11[%c0_30, %c0_31] : memref<1x32xf32, #tpu.memory_space<vmem>>, vector<1x32xf32>
        tpu.vector_store %arg11[%c0_30, %c0_31], %54 {strides = array<i32>} : memref<1x32xf32, #tpu.memory_space<vmem>>, vector<1x32xf32>,
      } else {
      }
    } else {
    }
    %c0_i32_2 = arith.constant 0 : i32
    %11 = arith.cmpi sgt, %arg0, %c0_i32_2 : i32
    %12 = arith.extui %11 : i1 to i32
    %c0_i32_3 = arith.constant 0 : i32
    %13 = arith.cmpi ne, %12, %c0_i32_3 : i32
    scf.if %13 {
      %c0 = arith.constant 0 : index
      %c0_5 = arith.constant 0 : index
      %17 = vector.load %arg2[%c0, %c0_5] : memref<256x4xbf16, #tpu.memory_space<vmem>>, vector<256x4xbf16>
      %c0_6 = arith.constant 0 : index
      %c0_7 = arith.constant 0 : index
      %18 = vector.load %arg3[%c0_6, %c0_7] : memref<4x32xbf16, #tpu.memory_space<vmem>>, vector<4x32xbf16>
      %cst = arith.constant dense<0.000000e+00> : vector<256x32xf32>
      %19 = tpu.matmul %17, %18, %cst {dimension_numbers = #tpu.dot_dimension_numbers<[1], [0], [0], [1], [0, 0, 1, 1], [], []>} : vector<256x4xbf16>, vector<4x32xbf16>, vector<256x32xf32> -> vector<256x32xf32>
      %c0_8 = arith.constant 0 : index
      %c0_9 = arith.constant 0 : index
      %20 = vector.load %arg9[%c0_8, %c0_9] : memref<1x32xf32, #tpu.memory_space<vmem>>, vector<1x32xf32>
      %21 = vector.broadcast %20 : vector<1x32xf32> to vector<256x32xf32>
      %22 = arith.mulf %19, %21 : vector<256x32xf32>
      %c0_10 = arith.constant 0 : index
      %c0_11 = arith.constant 0 : index
      %23 = vector.load %arg11[%c0_10, %c0_11] : memref<1x32xf32, #tpu.memory_space<vmem>>, vector<1x32xf32>
      %24 = vector.broadcast %23 : vector<1x32xf32> to vector<256x32xf32>
      %25 = arith.addf %22, %24 : vector<256x32xf32>
      %cst_12 = arith.constant 0.000000e+00 : f32
      %26 = vector.broadcast %cst_12 : f32 to vector<256x32xf32>
      %27 = arith.maximumf %25, %26 : vector<256x32xf32>
      %28 = arith.truncf %27 : vector<256x32xf32> to vector<256x32xbf16>
      %c0_13 = arith.constant 0 : index
      %c0_14 = arith.constant 0 : index
      %29 = vector.load %arg13[%c0_13, %c0_14] : memref<256x128xbf16, #tpu.memory_space<vmem>>, vector<256x32xbf16>
      tpu.vector_store %arg13[%c0_13, %c0_14], %28 {strides = array<i32>} : memref<256x128xbf16, #tpu.memory_space<vmem>>, vector<256x32xbf16>,
    } else {
    }
    %c1_i32 = arith.constant 1 : i32
    %14 = arith.cmpi eq, %arg0, %c1_i32 : i32
    %15 = arith.extui %14 : i1 to i32
    %c0_i32_4 = arith.constant 0 : i32
    %16 = arith.cmpi ne, %15, %c0_i32_4 : i32
    scf.if %16 {
      %c0 = arith.constant 0 : index
      %c0_5 = arith.constant 0 : index
      %17 = vector.load %arg13[%c0, %c0_5] : memref<256x128xbf16, #tpu.memory_space<vmem>>, vector<256x32xbf16>
      %c0_6 = arith.constant 0 : index
      %c0_7 = arith.constant 0 : index
      %18 = vector.load %arg4[%c0_6, %c0_7] : memref<32x16xbf16, #tpu.memory_space<vmem>>, vector<32x16xbf16>
      %cst = arith.constant dense<0.000000e+00> : vector<256x16xf32>
      %19 = tpu.matmul %17, %18, %cst {dimension_numbers = #tpu.dot_dimension_numbers<[1], [0], [0], [1], [0, 0, 1, 1], [], []>} : vector<256x32xbf16>, vector<32x16xbf16>, vector<256x16xf32> -> vector<256x16xf32>
      %20 = vector.broadcast %7 : vector<256x1xf32> to vector<256x16xf32>
      %21 = arith.mulf %19, %20 : vector<256x16xf32>
      %cst_8 = arith.constant dense<0.000000e+00> : vector<16xf32>
      %22 = vector.multi_reduction <add>, %21, %cst_8 [0] : vector<256x16xf32> to vector<16xf32>
      %23 = vector.shape_cast %22 : vector<16xf32> to vector<1x16xf32>
      %24 = arith.mulf %21, %19 : vector<256x16xf32>
      %cst_9 = arith.constant dense<0.000000e+00> : vector<16xf32>
      %25 = vector.multi_reduction <add>, %24, %cst_9 [0] : vector<256x16xf32> to vector<16xf32>
      %26 = vector.shape_cast %25 : vector<16xf32> to vector<1x16xf32>
      %c0_i32_10 = arith.constant 0 : i32
      %27 = arith.cmpi eq, %arg1, %c0_i32_10 : i32
      %28 = arith.extui %27 : i1 to i32
      %c0_i32_11 = arith.constant 0 : i32
      %29 = arith.cmpi ne, %28, %c0_i32_11 : i32
      scf.if %29 {
        %c0_16 = arith.constant 0 : index
        %c0_17 = arith.constant 0 : index
        %36 = vector.load %arg16[%c0_16, %c0_17] : memref<1x16xf32, #tpu.memory_space<vmem>>, vector<1x16xf32>
        tpu.vector_store %arg16[%c0_16, %c0_17], %23 {strides = array<i32>} : memref<1x16xf32, #tpu.memory_space<vmem>>, vector<1x16xf32>,
        %c0_18 = arith.constant 0 : index
        %c0_19 = arith.constant 0 : index
        %37 = vector.load %arg17[%c0_18, %c0_19] : memref<1x16xf32, #tpu.memory_space<vmem>>, vector<1x16xf32>
        tpu.vector_store %arg17[%c0_18, %c0_19], %26 {strides = array<i32>} : memref<1x16xf32, #tpu.memory_space<vmem>>, vector<1x16xf32>,
      } else {
      }
      %c0_i32_12 = arith.constant 0 : i32
      %30 = arith.cmpi sgt, %arg1, %c0_i32_12 : i32
      %31 = arith.extui %30 : i1 to i32
      %c0_i32_13 = arith.constant 0 : i32
      %32 = arith.cmpi ne, %31, %c0_i32_13 : i32
      scf.if %32 {
        %c0_16 = arith.constant 0 : index
        %c0_17 = arith.constant 0 : index
        %36 = vector.load %arg16[%c0_16, %c0_17] : memref<1x16xf32, #tpu.memory_space<vmem>>, vector<1x16xf32>
        %37 = arith.addf %36, %23 : vector<1x16xf32>
        %c0_18 = arith.constant 0 : index
        %c0_19 = arith.constant 0 : index
        %38 = vector.load %arg16[%c0_18, %c0_19] : memref<1x16xf32, #tpu.memory_space<vmem>>, vector<1x16xf32>
        tpu.vector_store %arg16[%c0_18, %c0_19], %37 {strides = array<i32>} : memref<1x16xf32, #tpu.memory_space<vmem>>, vector<1x16xf32>,
        %c0_20 = arith.constant 0 : index
        %c0_21 = arith.constant 0 : index
        %39 = vector.load %arg17[%c0_20, %c0_21] : memref<1x16xf32, #tpu.memory_space<vmem>>, vector<1x16xf32>
        %40 = arith.addf %39, %26 : vector<1x16xf32>
        %c0_22 = arith.constant 0 : index
        %c0_23 = arith.constant 0 : index
        %41 = vector.load %arg17[%c0_22, %c0_23] : memref<1x16xf32, #tpu.memory_space<vmem>>, vector<1x16xf32>
        tpu.vector_store %arg17[%c0_22, %c0_23], %40 {strides = array<i32>} : memref<1x16xf32, #tpu.memory_space<vmem>>, vector<1x16xf32>,
      } else {
      }
      %c0_i32_14 = arith.constant 0 : i32
      %33 = arith.cmpi eq, %arg1, %c0_i32_14 : i32
      %34 = arith.extui %33 : i1 to i32
      %c0_i32_15 = arith.constant 0 : i32
      %35 = arith.cmpi ne, %34, %c0_i32_15 : i32
      scf.if %35 {
        %c0_16 = arith.constant 0 : index
        %c0_17 = arith.constant 0 : index
        %36 = vector.load %arg16[%c0_16, %c0_17] : memref<1x16xf32, #tpu.memory_space<vmem>>, vector<1x16xf32>
        %cst_18 = arith.constant 3.906250e-03 : f32
        %37 = vector.broadcast %cst_18 : f32 to vector<1x16xf32>
        %38 = arith.mulf %36, %37 : vector<1x16xf32>
        %c0_19 = arith.constant 0 : index
        %c0_20 = arith.constant 0 : index
        %39 = vector.load %arg17[%c0_19, %c0_20] : memref<1x16xf32, #tpu.memory_space<vmem>>, vector<1x16xf32>
        %cst_21 = arith.constant 3.906250e-03 : f32
        %40 = vector.broadcast %cst_21 : f32 to vector<1x16xf32>
        %41 = arith.mulf %39, %40 : vector<1x16xf32>
        %42 = arith.mulf %38, %38 : vector<1x16xf32>
        %43 = arith.subf %41, %42 : vector<1x16xf32>
        %cst_22 = arith.constant 0.000000e+00 : f32
        %44 = vector.broadcast %cst_22 : f32 to vector<1x16xf32>
        %45 = arith.maximumf %43, %44 : vector<1x16xf32>
        %cst_23 = arith.constant 9.99999974E-6 : f32
        %46 = vector.broadcast %cst_23 : f32 to vector<1x16xf32>
        %47 = arith.addf %45, %46 : vector<1x16xf32>
        %48 = math.rsqrt %47 : vector<1x16xf32>
        %c0_24 = arith.constant 0 : index
        %c0_25 = arith.constant 0 : index
        %49 = vector.load %arg6[%c0_24, %c0_25] : memref<1x16xf32, #tpu.memory_space<vmem>>, vector<1x16xf32>
        %50 = arith.mulf %49, %48 : vector<1x16xf32>
        %c0_26 = arith.constant 0 : index
        %c0_27 = arith.constant 0 : index
        %51 = vector.load %arg10[%c0_26, %c0_27] : memref<1x16xf32, #tpu.memory_space<vmem>>, vector<1x16xf32>
        tpu.vector_store %arg10[%c0_26, %c0_27], %50 {strides = array<i32>} : memref<1x16xf32, #tpu.memory_space<vmem>>, vector<1x16xf32>,
        %c0_28 = arith.constant 0 : index
        %c0_29 = arith.constant 0 : index
        %52 = vector.load %arg8[%c0_28, %c0_29] : memref<1x16xf32, #tpu.memory_space<vmem>>, vector<1x16xf32>
        %53 = arith.mulf %38, %50 : vector<1x16xf32>
        %54 = arith.subf %52, %53 : vector<1x16xf32>
        %c0_30 = arith.constant 0 : index
        %c0_31 = arith.constant 0 : index
        %55 = vector.load %arg12[%c0_30, %c0_31] : memref<1x16xf32, #tpu.memory_space<vmem>>, vector<1x16xf32>
        tpu.vector_store %arg12[%c0_30, %c0_31], %54 {strides = array<i32>} : memref<1x16xf32, #tpu.memory_space<vmem>>, vector<1x16xf32>,
      } else {
      }
    } else {
    }
    return
  }
  func.func @transform_0(%arg0: i32, %arg1: i32) -> (i32, i32) {
    %c0_i32 = arith.constant 0 : i32
    %c0_i32_0 = arith.constant 0 : i32
    return %arg1, %c0_i32 : i32, i32
  }
  func.func @transform_1(%arg0: i32, %arg1: i32) -> (i32, i32) {
    %c0_i32 = arith.constant 0 : i32
    %c0_i32_0 = arith.constant 0 : i32
    %c0_i32_1 = arith.constant 0 : i32
    return %c0_i32, %c0_i32_0 : i32, i32
  }
  func.func @transform_2(%arg0: i32, %arg1: i32) -> (i32, i32) {
    %c0_i32 = arith.constant 0 : i32
    %c0_i32_0 = arith.constant 0 : i32
    %c0_i32_1 = arith.constant 0 : i32
    return %c0_i32, %c0_i32_0 : i32, i32
  }
  func.func @transform_3(%arg0: i32, %arg1: i32) -> (i32, i32) {
    %c0_i32 = arith.constant 0 : i32
    %c0_i32_0 = arith.constant 0 : i32
    %c0_i32_1 = arith.constant 0 : i32
    return %c0_i32, %c0_i32_0 : i32, i32
  }
  func.func @transform_4(%arg0: i32, %arg1: i32) -> (i32, i32) {
    %c0_i32 = arith.constant 0 : i32
    %c0_i32_0 = arith.constant 0 : i32
    %c0_i32_1 = arith.constant 0 : i32
    return %c0_i32, %c0_i32_0 : i32, i32
  }
  func.func @transform_5(%arg0: i32, %arg1: i32) -> (i32, i32) {
    %c0_i32 = arith.constant 0 : i32
    %c0_i32_0 = arith.constant 0 : i32
    %c0_i32_1 = arith.constant 0 : i32
    return %c0_i32, %c0_i32_0 : i32, i32
  }
  func.func @transform_6(%arg0: i32, %arg1: i32) -> (i32, i32) {
    %c0_i32 = arith.constant 0 : i32
    %c0_i32_0 = arith.constant 0 : i32
    %c0_i32_1 = arith.constant 0 : i32
    return %c0_i32, %c0_i32_0 : i32, i32
  }
  func.func @transform_7(%arg0: i32, %arg1: i32) -> (i32, i32) {
    %c0_i32 = arith.constant 0 : i32
    %c0_i32_0 = arith.constant 0 : i32
    %c0_i32_1 = arith.constant 0 : i32
    return %c0_i32, %c0_i32_0 : i32, i32
  }
  func.func @transform_8(%arg0: i32, %arg1: i32) -> (i32, i32) {
    %c0_i32 = arith.constant 0 : i32
    %c0_i32_0 = arith.constant 0 : i32
    %c0_i32_1 = arith.constant 0 : i32
    return %c0_i32, %c0_i32_0 : i32, i32
  }
  func.func @transform_9(%arg0: i32, %arg1: i32) -> (i32, i32) {
    %c0_i32 = arith.constant 0 : i32
    %c0_i32_0 = arith.constant 0 : i32
    %c0_i32_1 = arith.constant 0 : i32
    return %c0_i32, %c0_i32_0 : i32, i32
  }
  func.func @transform_10(%arg0: i32, %arg1: i32) -> (i32, i32) {
    %c0_i32 = arith.constant 0 : i32
    %c0_i32_0 = arith.constant 0 : i32
    %c0_i32_1 = arith.constant 0 : i32
    return %c0_i32, %c0_i32_0 : i32, i32
  }
}

</mosaic_0001>

<llo_original>
// kernel: tpu_custom_call.1
$region0: #{tpu_custom_call.1}
  #allocation0 [shape = 'u32[]', space=smem, size = 0x4, offset = 0x4, fixed_abs, tag = 'smem constant byte address 0x4 - core index']
  #allocation1 [shape = 'u32[72,128]{1,0:T(1,128)}', space=vmem, size = 0x9000, scoped, tag = 'internal scratch']
  #allocation2 [shape = 'bf16[256,128]{1,0:T(8,128)(2,1)}', space=vmem, size = 0x10000, scoped, tag = 'scratch operand']
  #allocation3 [shape = 'f32[1,32]{1,0:T(1,128)}', space=vmem, size = 0x200, scoped, tag = 'scratch operand']
  #allocation4 [shape = 'f32[1,32]{1,0:T(1,128)}', space=vmem, size = 0x200, scoped, tag = 'scratch operand']
  #allocation5 [shape = 'f32[1,16]{1,0:T(1,128)}', space=vmem, size = 0x200, scoped, tag = 'scratch operand']
  #allocation6 [shape = 'f32[1,16]{1,0:T(1,128)}', space=vmem, size = 0x200, scoped, tag = 'scratch operand']
  %s0 = inlined_call_operand.vmem [shape: bf16[256,4], index: 0, kind: input, shape index: {}]
  %s1 = inlined_call_operand.vmem [shape: bf16[4,32], index: 1, kind: input, shape index: {}]
  %s2 = inlined_call_operand.vmem [shape: bf16[32,16], index: 2, kind: input, shape index: {}]
  %s3 = inlined_call_operand.vmem [shape: f32[1,32], index: 3, kind: input, shape index: {}]
  %s4 = inlined_call_operand.vmem [shape: f32[1,16], index: 4, kind: input, shape index: {}]
  %s5 = inlined_call_operand.vmem [shape: f32[1,32], index: 5, kind: input, shape index: {}]
  %s6 = inlined_call_operand.vmem [shape: f32[1,16], index: 6, kind: input, shape index: {}]
  %s7 = inlined_call_operand.hbm [shape: f32[1,32], index: 7, kind: output, shape index: {0}]
  %s8 = inlined_call_operand.hbm [shape: f32[1,16], index: 8, kind: output, shape index: {1}]
  %s9 = inlined_call_operand.hbm [shape: f32[1,32], index: 9, kind: output, shape index: {2}]
  %s10 = inlined_call_operand.hbm [shape: f32[1,16], index: 10, kind: output, shape index: {3}]
  %11 = xla_tuple %s7, %s8, %s9, %s10
  %s12 = sld [smem:[#allocation0]]
  $region121: #{tpu_custom_call.1} parent=0
    _
  %s14 = ssub.s32 1, %s12
  %s15 = scalar_select 0, %s14, %s12
  $region1: #{tpu_custom_call.1} parent=0
    #allocation7 [shape = 'u8[512]{0}', space=vmem, size = 0x400, scoped, tag = 'output window, operand 0, single buffered']
    #allocation8 [shape = 's32[2]{0}', space=sflag, size = 0x8, scoped, tag = 'scoped memory for tpu_custom_call.1']
    #allocation9 [shape = 'u8[512]{0}', space=vmem, size = 0x400, scoped, tag = 'output window, operand 1, single buffered']
    #allocation10 [shape = 's32[1]{0}', space=sflag, size = 0x4, scoped, tag = 'scoped memory for tpu_custom_call.1']
    #allocation11 [shape = 'u8[512]{0}', space=vmem, size = 0x400, scoped, tag = 'output window, operand 2, single buffered']
    #allocation12 [shape = 'u8[512]{0}', space=vmem, size = 0x400, scoped, tag = 'output window, operand 3, single buffered']
    #allocation13 [shape = 's32[1]{0}', space=sflag, size = 0x4, scoped, tag = 'scoped memory for tpu_custom_call.1']
    %16 = vsyncpa [#allocation8], 0
    %17 = vsyncpa [#allocation10], 0
    %18 = vsyncpa [#allocation13], 0
    loop: start=0, step=1, limit=4
    $region2: #{tpu_custom_call.1} parent=1 // loop_pre_header
      _
    $region3: #{tpu_custom_call.1} parent=1 // loop_header
      %s20 = sphi 0, %s24
      %p21 = scmp.ge.s32.totalorder %s20, 4
      %s27 = sphi 0, %s39
      %s28 = sphi 0, %s35
      %s29 = sphi 0, %s27
      %s30 = sphi 0, %s28
      %s31 = sphi 0, %s29
      %s32 = sphi 0, %s30
      %s42 = sphi 0, %s44
      %s45 = sphi 0, %s42
      %s46 = sphi 0, %s45
      %s62 = sphi 0, %s46
      %s66 = sphi 0, %s66
      %s68 = sphi 0, %s66
      %s69 = sphi 0, %s68
      %s83 = sphi 0, %s69
      %s87 = sphi 0, %s87
      %s89 = sphi 0, %s87
      %s90 = sphi 0, %s89
      %s104 = sphi 0, %s90
      %s108 = sphi 0, %s108
      %s110 = sphi 0, %s108
      %s111 = sphi 0, %s110
      %s125 = sphi 0, %s111
      %s129 = sphi 0, %s129
      %s131 = sphi 0, %s129
      %s132 = sphi 0, %s131
      %s146 = sphi 0, %s132
      %s150 = sphi 0, %s150
      %s152 = sphi 0, %s150
      %s153 = sphi 0, %s152
      %s167 = sphi 0, %s153
      %s171 = sphi 0, %s171
      %s173 = sphi 0, %s171
      %s174 = sphi 0, %s173
      %s188 = sphi 0, %s174
      %s192 = sphi 0, %s192
      %s194 = sphi 0, %s192
      %s195 = sphi 0, %s194
      %s209 = sphi 0, %s195
      %s213 = sphi 0, %s213
      %s215 = sphi 0, %s213
      %s216 = sphi 0, %s215
      %s230 = sphi 0, %s216
      %s234 = sphi 0, %s234
      %s236 = sphi 0, %s234
      %s237 = sphi 0, %s236
      %s251 = sphi 0, %s237
      %s255 = sphi 0, %s255
      %s257 = sphi 0, %s255
      %s258 = sphi 0, %s257
      %s272 = sphi 0, %s258
    $region4: #{tpu_custom_call.1} parent=1 // loop_header_branch
      %23 = sbr.rel (%p21) target = $region8
    $region5: #{tpu_custom_call.1} parent=1 // loop_body
      %s25 = ssub.s32 %s20, 1
      %s26 = ssub.s32 %s20, 2
      %s33 = sadd.s32 1, %s28
      %p34 = scmp.ge.s32.totalorder %s33, 1
      %s35 = scalar_select %p34, 0, %s33
      %s36 = sadd.s32 1, %s27
      %s37 = scalar_select %p34, %s36, %s27
      %p38 = scmp.ge.s32.totalorder %s37, 2
      %s39 = scalar_select %p38, 0, %s37
      %s40 = ssub.s32 %s28, %s35
      %p41 = scmp.eq.s32.totalorder %s40, 0
      %s43 = sadd.s32 %s42, 1
      %s44 = scalar_select %p41, %s42, %s43
      %p47 = pneg %p41
      %p48 = scmp.eq.s32.totalorder %s20, 1
      %p49 = por %p47, %p48
      %p50 = scmp.ne.s32.totalorder %s42, %s45
      %p51 = scmp.eq.s32.totalorder %s20, 0
      %p52 = por %p50, %p51
      %p53 = scmp.ne.s32.totalorder %s42, %s45
      %p54 = scmp.eq.s32.totalorder %s25, 1
      %p55 = por %p53, %p54
      %p56 = scmp.ne.s32.totalorder %s45, %s46
      %p57 = scmp.eq.s32.totalorder %s25, 0
      %p58 = por %p56, %p57
      %p59 = scmp.ne.s32.totalorder %s45, %s46
      %p60 = scmp.eq.s32.totalorder %s26, 1
      %p61 = por %p59, %p60
      %p63 = scmp.ne.s32.totalorder %s46, %s62
      %p64 = scmp.eq.s32.totalorder %s26, 0
      %p65 = por %p63, %p64
      %s67 = sadd.s32 %s66, 1
      %p70 = scmp.eq.s32.totalorder %s20, 1
      %p71 = scmp.ne.s32.totalorder %s66, %s68
      %p72 = scmp.eq.s32.totalorder %s20, 0
      %p73 = por %p71, %p72
      %p74 = scmp.ne.s32.totalorder %s66, %s68
      %p75 = scmp.eq.s32.totalorder %s25, 1
      %p76 = por %p74, %p75
      %p77 = scmp.ne.s32.totalorder %s68, %s69
      %p78 = scmp.eq.s32.totalorder %s25, 0
      %p79 = por %p77, %p78
      %p80 = scmp.ne.s32.totalorder %s68, %s69
      %p81 = scmp.eq.s32.totalorder %s26, 1
      %p82 = por %p80, %p81
      %p84 = scmp.ne.s32.totalorder %s69, %s83
      %p85 = scmp.eq.s32.totalorder %s26, 0
      %p86 = por %p84, %p85
      %s88 = sadd.s32 %s87, 1
      %p91 = scmp.eq.s32.totalorder %s20, 1
      %p92 = scmp.ne.s32.totalorder %s87, %s89
      %p93 = scmp.eq.s32.totalorder %s20, 0
      %p94 = por %p92, %p93
      %p95 = scmp.ne.s32.totalorder %s87, %s89
      %p96 = scmp.eq.s32.totalorder %s25, 1
      %p97 = por %p95, %p96
      %p98 = scmp.ne.s32.totalorder %s89, %s90
      %p99 = scmp.eq.s32.totalorder %s25, 0
      %p100 = por %p98, %p99
      %p101 = scmp.ne.s32.totalorder %s89, %s90
      %p102 = scmp.eq.s32.totalorder %s26, 1
      %p103 = por %p101, %p102
      %p105 = scmp.ne.s32.totalorder %s90, %s104
      %p106 = scmp.eq.s32.totalorder %s26, 0
      %p107 = por %p105, %p106
      %s109 = sadd.s32 %s108, 1
      %p112 = scmp.eq.s32.totalorder %s20, 1
      %p113 = scmp.ne.s32.totalorder %s108, %s110
      %p114 = scmp.eq.s32.totalorder %s20, 0
      %p115 = por %p113, %p114
      %p116 = scmp.ne.s32.totalorder %s108, %s110
      %p117 = scmp.eq.s32.totalorder %s25, 1
      %p118 = por %p116, %p117
      %p119 = scmp.ne.s32.totalorder %s110, %s111
      %p120 = scmp.eq.s32.totalorder %s25, 0
      %p121 = por %p119, %p120
      %p122 = scmp.ne.s32.totalorder %s110, %s111
      %p123 = scmp.eq.s32.totalorder %s26, 1
      %p124 = por %p122, %p123
      %p126 = scmp.ne.s32.totalorder %s111, %s125
      %p127 = scmp.eq.s32.totalorder %s26, 0
      %p128 = por %p126, %p127
      %s130 = sadd.s32 %s129, 1
      %p133 = scmp.eq.s32.totalorder %s20, 1
      %p134 = scmp.ne.s32.totalorder %s129, %s131
      %p135 = scmp.eq.s32.totalorder %s20, 0
      %p136 = por %p134, %p135
      %p137 = scmp.ne.s32.totalorder %s129, %s131
      %p138 = scmp.eq.s32.totalorder %s25, 1
      %p139 = por %p137, %p138
      %p140 = scmp.ne.s32.totalorder %s131, %s132
      %p141 = scmp.eq.s32.totalorder %s25, 0
      %p142 = por %p140, %p141
      %p143 = scmp.ne.s32.totalorder %s131, %s132
      %p144 = scmp.eq.s32.totalorder %s26, 1
      %p145 = por %p143, %p144
      %p147 = scmp.ne.s32.totalorder %s132, %s146
      %p148 = scmp.eq.s32.totalorder %s26, 0
      %p149 = por %p147, %p148
      %s151 = sadd.s32 %s150, 1
      %p154 = scmp.eq.s32.totalorder %s20, 1
      %p155 = scmp.ne.s32.totalorder %s150, %s152
      %p156 = scmp.eq.s32.totalorder %s20, 0
      %p157 = por %p155, %p156
      %p158 = scmp.ne.s32.totalorder %s150, %s152
      %p159 = scmp.eq.s32.totalorder %s25, 1
      %p160 = por %p158, %p159
      %p161 = scmp.ne.s32.totalorder %s152, %s153
      %p162 = scmp.eq.s32.totalorder %s25, 0
      %p163 = por %p161, %p162
      %p164 = scmp.ne.s32.totalorder %s152, %s153
      %p165 = scmp.eq.s32.totalorder %s26, 1
      %p166 = por %p164, %p165
      %p168 = scmp.ne.s32.totalorder %s153, %s167
      %p169 = scmp.eq.s32.totalorder %s26, 0
      %p170 = por %p168, %p169
      %s172 = sadd.s32 %s171, 1
      %p175 = scmp.eq.s32.totalorder %s20, 1
      %p176 = scmp.ne.s32.totalorder %s171, %s173
      %p177 = scmp.eq.s32.totalorder %s20, 0
      %p178 = por %p176, %p177
      %p179 = scmp.ne.s32.totalorder %s171, %s173
      %p180 = scmp.eq.s32.totalorder %s25, 1
      %p181 = por %p179, %p180
      %p182 = scmp.ne.s32.totalorder %s173, %s174
      %p183 = scmp.eq.s32.totalorder %s25, 0
      %p184 = por %p182, %p183
      %p185 = scmp.ne.s32.totalorder %s173, %s174
      %p186 = scmp.eq.s32.totalorder %s26, 1
      %p187 = por %p185, %p186
      %p189 = scmp.ne.s32.totalorder %s174, %s188
      %p190 = scmp.eq.s32.totalorder %s26, 0
      %p191 = por %p189, %p190
      %s193 = sadd.s32 %s192, 1
      %p196 = scmp.eq.s32.totalorder %s20, 1
      %p197 = scmp.ne.s32.totalorder %s192, %s194
      %p198 = scmp.eq.s32.totalorder %s20, 0
      %p199 = por %p197, %p198
      %p200 = scmp.ne.s32.totalorder %s192, %s194
      %p201 = scmp.eq.s32.totalorder %s25, 1
      %p202 = por %p200, %p201
      %p203 = scmp.ne.s32.totalorder %s194, %s195
      %p204 = scmp.eq.s32.totalorder %s25, 0
      %p205 = por %p203, %p204
      %p206 = scmp.ne.s32.totalorder %s194, %s195
      %p207 = scmp.eq.s32.totalorder %s26, 1
      %p208 = por %p206, %p207
      %p210 = scmp.ne.s32.totalorder %s195, %s209
      %p211 = scmp.eq.s32.totalorder %s26, 0
      %p212 = por %p210, %p211
      %s214 = sadd.s32 %s213, 1
      %p217 = scmp.eq.s32.totalorder %s20, 1
      %p218 = scmp.ne.s32.totalorder %s213, %s215
      %p219 = scmp.eq.s32.totalorder %s20, 0
      %p220 = por %p218, %p219
      %p221 = scmp.ne.s32.totalorder %s213, %s215
      %p222 = scmp.eq.s32.totalorder %s25, 1
      %p223 = por %p221, %p222
      %p224 = scmp.ne.s32.totalorder %s215, %s216
      %p225 = scmp.eq.s32.totalorder %s25, 0
      %p226 = por %p224, %p225
      %p227 = scmp.ne.s32.totalorder %s215, %s216
      %p228 = scmp.eq.s32.totalorder %s26, 1
      %p229 = por %p227, %p228
      %p231 = scmp.ne.s32.totalorder %s216, %s230
      %p232 = scmp.eq.s32.totalorder %s26, 0
      %p233 = por %p231, %p232
      %s235 = sadd.s32 %s234, 1
      %p238 = scmp.eq.s32.totalorder %s20, 1
      %p239 = scmp.ne.s32.totalorder %s234, %s236
      %p240 = scmp.eq.s32.totalorder %s20, 0
      %p241 = por %p239, %p240
      %p242 = scmp.ne.s32.totalorder %s234, %s236
      %p243 = scmp.eq.s32.totalorder %s25, 1
      %p244 = por %p242, %p243
      %p245 = scmp.ne.s32.totalorder %s236, %s237
      %p246 = scmp.eq.s32.totalorder %s25, 0
      %p247 = por %p245, %p246
      %p248 = scmp.ne.s32.totalorder %s236, %s237
      %p249 = scmp.eq.s32.totalorder %s26, 1
      %p250 = por %p248, %p249
      %p252 = scmp.ne.s32.totalorder %s237, %s251
      %p253 = scmp.eq.s32.totalorder %s26, 0
      %p254 = por %p252, %p253
      %s256 = sadd.s32 %s255, 1
      %p259 = scmp.eq.s32.totalorder %s20, 1
      %p260 = scmp.ne.s32.totalorder %s255, %s257
      %p261 = scmp.eq.s32.totalorder %s20, 0
      %p262 = por %p260, %p261
      %p263 = scmp.ne.s32.totalorder %s255, %s257
      %p264 = scmp.eq.s32.totalorder %s25, 1
      %p265 = por %p263, %p264
      %p266 = scmp.ne.s32.totalorder %s257, %s258
      %p267 = scmp.eq.s32.totalorder %s25, 0
      %p268 = por %p266, %p267
      %p269 = scmp.ne.s32.totalorder %s257, %s258
      %p270 = scmp.eq.s32.totalorder %s26, 1
      %p271 = por %p269, %p270
      %p273 = scmp.ne.s32.totalorder %s258, %s272
      %p274 = scmp.eq.s32.totalorder %s26, 0
      %p275 = por %p273, %p274
      %p276 = scmp.le.s32.totalorder 1, %s20
      %p277 = scmp.lt.s32.totalorder %s20, 3
      %p278 = pnand %p276, %p277
      %p279 = pneg %p278
      // Predicated region
      $region9: #{tpu_custom_call.1} parent=5 // pred_check
        _
      $region10: #{tpu_custom_call.1} parent=5 // pred_check_branch
        %281 = sbr.rel (%p278) target = $region12
      $region11: #{tpu_custom_call.1} parent=5 // pred_region
        %s282 = ssub.s32 %s20, 1
        // Predicated region
        $region13: #{tpu_custom_call.1} parent=11 // pred_check
          %p283 = pneg %p58
        $region14: #{tpu_custom_call.1} parent=11 // pred_check_branch
          %285 = sbr.rel (%p283) target = $region16
        $region15: #{tpu_custom_call.1} parent=11 // pred_region
          %s286 = smul.u32 32, %s30
          %p287 = scmp.lt.s32.totalorder %s286, 31
          %s288 = scalar_select %p287, %s286, 31
          %s289 = smul.addr %s288, 4
          %s290 = scalar_lea.vmem %s0, %s289
          %s291 = smul.u32 32, %s30
        $region16: #{tpu_custom_call.1} parent=11 // pred_fallthru
          _
        // Predicated region
        $region17: #{tpu_custom_call.1} parent=11 // pred_check
          %p292 = pneg %p79
        $region18: #{tpu_custom_call.1} parent=11 // pred_check_branch
          %294 = sbr.rel (%p292) target = $region20
        $region19: #{tpu_custom_call.1} parent=11 // pred_region
          _
        $region20: #{tpu_custom_call.1} parent=11 // pred_fallthru
          _
        // Predicated region
        $region21: #{tpu_custom_call.1} parent=11 // pred_check
          %p295 = pneg %p100
        $region22: #{tpu_custom_call.1} parent=11 // pred_check_branch
          %297 = sbr.rel (%p295) target = $region24
        $region23: #{tpu_custom_call.1} parent=11 // pred_region
          _
        $region24: #{tpu_custom_call.1} parent=11 // pred_fallthru
          _
        // Predicated region
        $region25: #{tpu_custom_call.1} parent=11 // pred_check
          %p298 = pneg %p121
        $region26: #{tpu_custom_call.1} parent=11 // pred_check_branch
          %300 = sbr.rel (%p298) target = $region28
        $region27: #{tpu_custom_call.1} parent=11 // pred_region
          _
        $region28: #{tpu_custom_call.1} parent=11 // pred_fallthru
          _
        // Predicated region
        $region29: #{tpu_custom_call.1} parent=11 // pred_check
          %p301 = pneg %p142
        $region30: #{tpu_custom_call.1} parent=11 // pred_check_branch
          %303 = sbr.rel (%p301) target = $region32
        $region31: #{tpu_custom_call.1} parent=11 // pred_region
          _
        $region32: #{tpu_custom_call.1} parent=11 // pred_fallthru
          _
        // Predicated region
        $region33: #{tpu_custom_call.1} parent=11 // pred_check
          %p304 = pneg %p163
        $region34: #{tpu_custom_call.1} parent=11 // pred_check_branch
          %306 = sbr.rel (%p304) target = $region36
        $region35: #{tpu_custom_call.1} parent=11 // pred_region
          _
        $region36: #{tpu_custom_call.1} parent=11 // pred_fallthru
          _
        // Predicated region
        $region37: #{tpu_custom_call.1} parent=11 // pred_check
          %p307 = pneg %p184
        $region38: #{tpu_custom_call.1} parent=11 // pred_check_branch
          %309 = sbr.rel (%p307) target = $region40
        $region39: #{tpu_custom_call.1} parent=11 // pred_region
          _
        $region40: #{tpu_custom_call.1} parent=11 // pred_fallthru
          _
      $region12: #{tpu_custom_call.1} parent=5 // pred_fallthru
        _
      %p310 = scmp.lt.s32.totalorder %s20, 2
      // Predicated region
      $region41: #{tpu_custom_call.1} parent=5 // pred_check
        %p311 = pneg %p310
      $region42: #{tpu_custom_call.1} parent=5 // pred_check_branch
        %313 = sbr.rel (%p311) target = $region44
      $region43: #{tpu_custom_call.1} parent=5 // pred_region
        _
      $region44: #{tpu_custom_call.1} parent=5 // pred_fallthru
        _
      %p314 = scmp.le.s32.totalorder 1, %s20
      %p315 = scmp.lt.s32.totalorder %s20, 3
      %p316 = pnand %p314, %p315
      %p317 = pneg %p316
      // Predicated region
      $region45: #{tpu_custom_call.1} parent=5 // pred_check
        _
      $region46: #{tpu_custom_call.1} parent=5 // pred_check_branch
        %319 = sbr.rel (%p316) target = $region48
      $region47: #{tpu_custom_call.1} parent=5 // pred_region
        %s320 = ssub.s32 %s20, 1
        %s321 = smul.u32 32, %s30
        %p322 = scmp.lt.s32.totalorder %s321, 31
        %s323 = scalar_select %p322, %s321, 31
        %s324 = smul.addr %s323, 4
        %s325 = scalar_lea.vmem %s0, %s324
        %p326 = pneg %p58
        %p327 = pneg %p55
        %p328 = pneg %p79
        %p329 = pneg %p76
        %p330 = pneg %p100
        %p331 = pneg %p97
        %p332 = pneg %p121
        %p333 = pneg %p118
        %p334 = pneg %p142
        %p335 = pneg %p139
        %p336 = pneg %p163
        %p337 = pneg %p160
        %p338 = pneg %p184
        %p339 = pneg %p181
        %p340 = pneg %p205
        %p341 = pneg %p202
        %p342 = pneg %p226
        %p343 = pneg %p223
        %p344 = pneg %p247
        %p345 = pneg %p244
        %p346 = pneg %p268
        %p347 = pneg %p265
        %s348 = smul.u32 32, %s30
        %p349 = scmp.lt.s32.totalorder %s348, 31
        %s350 = scalar_select %p349, %s348, 31
        %s351 = smul.addr %s350, 4
        %s352 = scalar_lea.vmem %s0, %s351
        %s353 = smul.u32 32, %s30
        %s355 = smul.u32 %s30, 256
        %v356 = vlaneseq
        %v357 = vshrl.u32 %v356, 7
        %v358 = vadd.s32 %v357, 8
        %v359 = vadd.s32 %v357, 16
        %v360 = vadd.s32 %v357, 24
        %v361 = vadd.s32 %v357, 32
        %v362 = vadd.s32 %v357, 40
        %v363 = vadd.s32 %v357, 48
        %v364 = vadd.s32 %v357, 56
        %v365 = vadd.s32 %v357, 64
        %v366 = vadd.s32 %v357, 72
        %v367 = vadd.s32 %v357, 80
        %v368 = vadd.s32 %v357, 88
        %v369 = vadd.s32 %v357, 96
        %v370 = vadd.s32 %v357, 104
        %v371 = vadd.s32 %v357, 112
        %v372 = vadd.s32 %v357, 120
        %v373 = vadd.s32 %v357, 128
        %v374 = vadd.s32 %v357, 136
        %v375 = vadd.s32 %v357, 144
        %v376 = vadd.s32 %v357, 152
        %v377 = vadd.s32 %v357, 160
        %v378 = vadd.s32 %v357, 168
        %v379 = vadd.s32 %v357, 176
        %v380 = vadd.s32 %v357, 184
        %v381 = vadd.s32 %v357, 192
        %v382 = vadd.s32 %v357, 200
        %v383 = vadd.s32 %v357, 208
        %v384 = vadd.s32 %v357, 216
        %v385 = vadd.s32 %v357, 224
        %v386 = vadd.s32 %v357, 232
        %v387 = vadd.s32 %v357, 240
        %v388 = vadd.s32 %v357, 248
        %v389 = vstv %s355
        %v390 = vadd.s32 %v389, %v357
        %v391 = vadd.s32 %v389, %v358
        %v392 = vadd.s32 %v389, %v359
        %v393 = vadd.s32 %v389, %v360
        %v394 = vadd.s32 %v389, %v361
        %v395 = vadd.s32 %v389, %v362
        %v396 = vadd.s32 %v389, %v363
        %v397 = vadd.s32 %v389, %v364
        %v398 = vadd.s32 %v389, %v365
        %v399 = vadd.s32 %v389, %v366
        %v400 = vadd.s32 %v389, %v367
        %v401 = vadd.s32 %v389, %v368
        %v402 = vadd.s32 %v389, %v369
        %v403 = vadd.s32 %v389, %v370
        %v404 = vadd.s32 %v389, %v371
        %v405 = vadd.s32 %v389, %v372
        %v406 = vadd.s32 %v389, %v373
        %v407 = vadd.s32 %v389, %v374
        %v408 = vadd.s32 %v389, %v375
        %v409 = vadd.s32 %v389, %v376
        %v410 = vadd.s32 %v389, %v377
        %v411 = vadd.s32 %v389, %v378
        %v412 = vadd.s32 %v389, %v379
        %v413 = vadd.s32 %v389, %v380
        %v414 = vadd.s32 %v389, %v381
        %v415 = vadd.s32 %v389, %v382
        %v416 = vadd.s32 %v389, %v383
        %v417 = vadd.s32 %v389, %v384
        %v418 = vadd.s32 %v389, %v385
        %v419 = vadd.s32 %v389, %v386
        %v420 = vadd.s32 %v389, %v387
        %v421 = vadd.s32 %v389, %v388
        %vm422 = vcmp.lt.s32.totalorder %v390, 256
        %vm423 = vcmp.lt.s32.totalorder %v391, 256
        %vm424 = vcmp.lt.s32.totalorder %v392, 256
        %vm425 = vcmp.lt.s32.totalorder %v393, 256
        %vm426 = vcmp.lt.s32.totalorder %v394, 256
        %vm427 = vcmp.lt.s32.totalorder %v395, 256
        %vm428 = vcmp.lt.s32.totalorder %v396, 256
        %vm429 = vcmp.lt.s32.totalorder %v397, 256
        %vm430 = vcmp.lt.s32.totalorder %v398, 256
        %vm431 = vcmp.lt.s32.totalorder %v399, 256
        %vm432 = vcmp.lt.s32.totalorder %v400, 256
        %vm433 = vcmp.lt.s32.totalorder %v401, 256
        %vm434 = vcmp.lt.s32.totalorder %v402, 256
        %vm435 = vcmp.lt.s32.totalorder %v403, 256
        %vm436 = vcmp.lt.s32.totalorder %v404, 256
        %vm437 = vcmp.lt.s32.totalorder %v405, 256
        %vm438 = vcmp.lt.s32.totalorder %v406, 256
        %vm439 = vcmp.lt.s32.totalorder %v407, 256
        %vm440 = vcmp.lt.s32.totalorder %v408, 256
        %vm441 = vcmp.lt.s32.totalorder %v409, 256
        %vm442 = vcmp.lt.s32.totalorder %v410, 256
        %vm443 = vcmp.lt.s32.totalorder %v411, 256
        %vm444 = vcmp.lt.s32.totalorder %v412, 256
        %vm445 = vcmp.lt.s32.totalorder %v413, 256
        %vm446 = vcmp.lt.s32.totalorder %v414, 256
        %vm447 = vcmp.lt.s32.totalorder %v415, 256
        %vm448 = vcmp.lt.s32.totalorder %v416, 256
        %vm449 = vcmp.lt.s32.totalorder %v417, 256
        %vm450 = vcmp.lt.s32.totalorder %v418, 256
        %vm451 = vcmp.lt.s32.totalorder %v419, 256
        %vm452 = vcmp.lt.s32.totalorder %v420, 256
        %vm453 = vcmp.lt.s32.totalorder %v421, 256
        %v454 = vsel %vm422, 1, 0
        %v455 = vsel %vm423, 1, 0
        %v456 = vsel %vm424, 1, 0
        %v457 = vsel %vm425, 1, 0
        %v458 = vsel %vm426, 1, 0
        %v459 = vsel %vm427, 1, 0
        %v460 = vsel %vm428, 1, 0
        %v461 = vsel %vm429, 1, 0
        %v462 = vsel %vm430, 1, 0
        %v463 = vsel %vm431, 1, 0
        %v464 = vsel %vm432, 1, 0
        %v465 = vsel %vm433, 1, 0
        %v466 = vsel %vm434, 1, 0
        %v467 = vsel %vm435, 1, 0
        %v468 = vsel %vm436, 1, 0
        %v469 = vsel %vm437, 1, 0
        %v470 = vsel %vm438, 1, 0
        %v471 = vsel %vm439, 1, 0
        %v472 = vsel %vm440, 1, 0
        %v473 = vsel %vm441, 1, 0
        %v474 = vsel %vm442, 1, 0
        %v475 = vsel %vm443, 1, 0
        %v476 = vsel %vm444, 1, 0
        %v477 = vsel %vm445, 1, 0
        %v478 = vsel %vm446, 1, 0
        %v479 = vsel %vm447, 1, 0
        %v480 = vsel %vm448, 1, 0
        %v481 = vsel %vm449, 1, 0
        %v482 = vsel %vm450, 1, 0
        %v483 = vsel %vm451, 1, 0
        %v484 = vsel %vm452, 1, 0
        %v485 = vsel %vm453, 1, 0
        %v486 = vcvt.s32.f32 %v454
        %v487 = vcvt.s32.f32 %v455
        %v488 = vcvt.s32.f32 %v456
        %v489 = vcvt.s32.f32 %v457
        %v490 = vcvt.s32.f32 %v458
        %v491 = vcvt.s32.f32 %v459
        %v492 = vcvt.s32.f32 %v460
        %v493 = vcvt.s32.f32 %v461
        %v494 = vcvt.s32.f32 %v462
        %v495 = vcvt.s32.f32 %v463
        %v496 = vcvt.s32.f32 %v464
        %v497 = vcvt.s32.f32 %v465
        %v498 = vcvt.s32.f32 %v466
        %v499 = vcvt.s32.f32 %v467
        %v500 = vcvt.s32.f32 %v468
        %v501 = vcvt.s32.f32 %v469
        %v502 = vcvt.s32.f32 %v470
        %v503 = vcvt.s32.f32 %v471
        %v504 = vcvt.s32.f32 %v472
        %v505 = vcvt.s32.f32 %v473
        %v506 = vcvt.s32.f32 %v474
        %v507 = vcvt.s32.f32 %v475
        %v508 = vcvt.s32.f32 %v476
        %v509 = vcvt.s32.f32 %v477
        %v510 = vcvt.s32.f32 %v478
        %v511 = vcvt.s32.f32 %v479
        %v512 = vcvt.s32.f32 %v480
        %v513 = vcvt.s32.f32 %v481
        %v514 = vcvt.s32.f32 %v482
        %v515 = vcvt.s32.f32 %v483
        %v516 = vcvt.s32.f32 %v484
        %v517 = vcvt.s32.f32 %v485
        %p518 = scmp.eq.s32.totalorder %s29, 0
        // Predicated region
        $region49: #{tpu_custom_call.1} parent=47 // pred_check
          %p519 = pneg %p518
        $region50: #{tpu_custom_call.1} parent=47 // pred_check_branch
          %521 = sbr.rel (%p519) target = $region52
        $region51: #{tpu_custom_call.1} parent=47 // pred_region
          %v522 = vld [vmem:[%s352] sm:$0xf]
          %v523 = vld [vmem:[%s352 + $0x4] sm:$0xf]
          %v524 = vld [vmem:[%s352 + $0x8] sm:$0xf]
          %v525 = vld [vmem:[%s352 + $0xc] sm:$0xf]
          %v526 = vld [vmem:[%s352 + $0x10] sm:$0xf]
          %v527 = vld [vmem:[%s352 + $0x14] sm:$0xf]
          %v528 = vld [vmem:[%s352 + $0x18] sm:$0xf]
          %v529 = vld [vmem:[%s352 + $0x1c] sm:$0xf]
          %v530 = vld [vmem:[%s352 + $0x20] sm:$0xf]
          %v531 = vld [vmem:[%s352 + $0x24] sm:$0xf]
          %v532 = vld [vmem:[%s352 + $0x28] sm:$0xf]
          %v533 = vld [vmem:[%s352 + $0x2c] sm:$0xf]
          %v534 = vld [vmem:[%s352 + $0x30] sm:$0xf]
          %v535 = vld [vmem:[%s352 + $0x34] sm:$0xf]
          %v536 = vld [vmem:[%s352 + $0x38] sm:$0xf]
          %v537 = vld [vmem:[%s352 + $0x3c] sm:$0xf]
          %v538 = vld [vmem:[%s352 + $0x40] sm:$0xf]
          %v539 = vld [vmem:[%s352 + $0x44] sm:$0xf]
          %v540 = vld [vmem:[%s352 + $0x48] sm:$0xf]
          %v541 = vld [vmem:[%s352 + $0x4c] sm:$0xf]
          %v542 = vld [vmem:[%s352 + $0x50] sm:$0xf]
          %v543 = vld [vmem:[%s352 + $0x54] sm:$0xf]
          %v544 = vld [vmem:[%s352 + $0x58] sm:$0xf]
          %v545 = vld [vmem:[%s352 + $0x5c] sm:$0xf]
          %v546 = vld [vmem:[%s352 + $0x60] sm:$0xf]
          %v547 = vld [vmem:[%s352 + $0x64] sm:$0xf]
          %v548 = vld [vmem:[%s352 + $0x68] sm:$0xf]
          %v549 = vld [vmem:[%s352 + $0x6c] sm:$0xf]
          %v550 = vld [vmem:[%s352 + $0x70] sm:$0xf]
          %v551 = vld [vmem:[%s352 + $0x74] sm:$0xf]
          %v552 = vld [vmem:[%s352 + $0x78] sm:$0xf]
          %v553 = vld [vmem:[%s352 + $0x7c] sm:$0xf]
          %v554 = vld [vmem:[%s1] sm:$0x3]
          %v587 = vunpack.c.l.b16 %v522
          %v588 = vunpack.c.l.b16 %v523
          %v589 = vunpack.c.l.b16 %v524
          %v590 = vunpack.c.l.b16 %v525
          %v591 = vunpack.c.l.b16 %v526
          %v592 = vunpack.c.l.b16 %v527
          %v593 = vunpack.c.l.b16 %v528
          %v594 = vunpack.c.l.b16 %v529
          %v595 = vunpack.c.l.b16 %v530
          %v596 = vunpack.c.l.b16 %v531
          %v597 = vunpack.c.l.b16 %v532
          %v598 = vunpack.c.l.b16 %v533
          %v599 = vunpack.c.l.b16 %v534
          %v600 = vunpack.c.l.b16 %v535
          %v601 = vunpack.c.l.b16 %v536
          %v602 = vunpack.c.l.b16 %v537
          %v603 = vunpack.c.l.b16 %v538
          %v604 = vunpack.c.l.b16 %v539
          %v605 = vunpack.c.l.b16 %v540
          %v606 = vunpack.c.l.b16 %v541
          %v607 = vunpack.c.l.b16 %v542
          %v608 = vunpack.c.l.b16 %v543
          %v609 = vunpack.c.l.b16 %v544
          %v610 = vunpack.c.l.b16 %v545
          %v611 = vunpack.c.l.b16 %v546
          %v612 = vunpack.c.l.b16 %v547
          %v613 = vunpack.c.l.b16 %v548
          %v614 = vunpack.c.l.b16 %v549
          %v615 = vunpack.c.l.b16 %v550
          %v616 = vunpack.c.l.b16 %v551
          %v617 = vunpack.c.l.b16 %v552
          %v618 = vunpack.c.l.b16 %v553
          %v619 = vpack.c.b16 %v588, %v587
          %v620 = vpack.c.b16 %v590, %v589
          %v621 = vpack.c.b16 %v592, %v591
          %v622 = vpack.c.b16 %v594, %v593
          %v623 = vpack.c.b16 %v596, %v595
          %v624 = vpack.c.b16 %v598, %v597
          %v625 = vpack.c.b16 %v600, %v599
          %v626 = vpack.c.b16 %v602, %v601
          %v627 = vpack.c.b16 %v604, %v603
          %v628 = vpack.c.b16 %v606, %v605
          %v629 = vpack.c.b16 %v608, %v607
          %v630 = vpack.c.b16 %v610, %v609
          %v631 = vpack.c.b16 %v612, %v611
          %v632 = vpack.c.b16 %v614, %v613
          %v633 = vpack.c.b16 %v616, %v615
          %v634 = vpack.c.b16 %v618, %v617
          %vm635 = vcmask 31744
          %v637 = vsel %vm635, %v619, 0
          %v640 = vsel %vm635, %v620, 0
          %v643 = vsel %vm635, %v621, 0
          %v646 = vsel %vm635, %v622, 0
          %v649 = vsel %vm635, %v623, 0
          %v652 = vsel %vm635, %v624, 0
          %v655 = vsel %vm635, %v625, 0
          %v658 = vsel %vm635, %v626, 0
          %v661 = vsel %vm635, %v627, 0
          %v664 = vsel %vm635, %v628, 0
          %v667 = vsel %vm635, %v629, 0
          %v670 = vsel %vm635, %v630, 0
          %v673 = vsel %vm635, %v631, 0
          %v676 = vsel %vm635, %v632, 0
          %v679 = vsel %vm635, %v633, 0
          %v682 = vsel %vm635, %v634, 0
          %vm684 = vcmask 1041408
          %v686 = vsel %vm684, %v554, 0
          %688 = vmatpush.bf16.msra.mxu0 0
          %689 = vmatpush.bf16.msra.mxu0 0
          %690 = vmatpush.bf16.msra.mxu0 0
          %691 = vmatpush.bf16.msra.mxu0 0
          %692 = vmatpush.bf16.msra.mxu0 0
          %693 = vmatpush.bf16.msra.mxu0 0
          %694 = vmatpush.bf16.msra.mxu0 0
          %695 = vmatpush.bf16.msra.mxu0 %v686
          %696 = vmatmul.bf16.gmra.mxu0 %v637
          %v697 = vpop.f32.mrf.mxu0
          %v698 = vadd.f32 0.0, %v697
          %v699 = vpop.f32.mrf.mxu0
          %v700 = vadd.f32 0.0, %v699
          %701 = vmatmul.bf16.gmra.mxu0 %v640
          %v702 = vpop.f32.mrf.mxu0
          %v703 = vadd.f32 0.0, %v702
          %v704 = vpop.f32.mrf.mxu0
          %v705 = vadd.f32 0.0, %v704
          %706 = vmatmul.bf16.gmra.mxu0 %v643
          %v707 = vpop.f32.mrf.mxu0
          %v708 = vadd.f32 0.0, %v707
          %v709 = vpop.f32.mrf.mxu0
          %v710 = vadd.f32 0.0, %v709
          %711 = vmatmul.bf16.gmra.mxu0 %v646
          %v712 = vpop.f32.mrf.mxu0
          %v713 = vadd.f32 0.0, %v712
          %v714 = vpop.f32.mrf.mxu0
          %v715 = vadd.f32 0.0, %v714
          %716 = vmatmul.bf16.gmra.mxu0 %v649
          %v717 = vpop.f32.mrf.mxu0
          %v718 = vadd.f32 0.0, %v717
          %v719 = vpop.f32.mrf.mxu0
          %v720 = vadd.f32 0.0, %v719
          %721 = vmatmul.bf16.gmra.mxu0 %v652
          %v722 = vpop.f32.mrf.mxu0
          %v723 = vadd.f32 0.0, %v722
          %v724 = vpop.f32.mrf.mxu0
          %v725 = vadd.f32 0.0, %v724
          %726 = vmatmul.bf16.gmra.mxu0 %v655
          %v727 = vpop.f32.mrf.mxu0
          %v728 = vadd.f32 0.0, %v727
          %v729 = vpop.f32.mrf.mxu0
          %v730 = vadd.f32 0.0, %v729
          %731 = vmatmul.bf16.gmra.mxu0 %v658
          %v732 = vpop.f32.mrf.mxu0
          %v733 = vadd.f32 0.0, %v732
          %v734 = vpop.f32.mrf.mxu0
          %v735 = vadd.f32 0.0, %v734
          %736 = vmatmul.bf16.gmra.mxu0 %v661
          %v737 = vpop.f32.mrf.mxu0
          %v738 = vadd.f32 0.0, %v737
          %v739 = vpop.f32.mrf.mxu0
          %v740 = vadd.f32 0.0, %v739
          %741 = vmatmul.bf16.gmra.mxu0 %v664
          %v742 = vpop.f32.mrf.mxu0
          %v743 = vadd.f32 0.0, %v742
          %v744 = vpop.f32.mrf.mxu0
          %v745 = vadd.f32 0.0, %v744
          %746 = vmatmul.bf16.gmra.mxu0 %v667
          %v747 = vpop.f32.mrf.mxu0
          %v748 = vadd.f32 0.0, %v747
          %v749 = vpop.f32.mrf.mxu0
          %v750 = vadd.f32 0.0, %v749
          %751 = vmatmul.bf16.gmra.mxu0 %v670
          %v752 = vpop.f32.mrf.mxu0
          %v753 = vadd.f32 0.0, %v752
          %v754 = vpop.f32.mrf.mxu0
          %v755 = vadd.f32 0.0, %v754
          %756 = vmatmul.bf16.gmra.mxu0 %v673
          %v757 = vpop.f32.mrf.mxu0
          %v758 = vadd.f32 0.0, %v757
          %v759 = vpop.f32.mrf.mxu0
          %v760 = vadd.f32 0.0, %v759
          %761 = vmatmul.bf16.gmra.mxu0 %v676
          %v762 = vpop.f32.mrf.mxu0
          %v763 = vadd.f32 0.0, %v762
          %v764 = vpop.f32.mrf.mxu0
          %v765 = vadd.f32 0.0, %v764
          %766 = vmatmul.bf16.gmra.mxu0 %v679
          %v767 = vpop.f32.mrf.mxu0
          %v768 = vadd.f32 0.0, %v767
          %v769 = vpop.f32.mrf.mxu0
          %v770 = vadd.f32 0.0, %v769
          %771 = vmatmul.bf16.gmra.mxu0 %v682
          %v772 = vpop.f32.mrf.mxu0
          %v773 = vadd.f32 0.0, %v772
          %v774 = vpop.f32.mrf.mxu0
          %v775 = vadd.f32 0.0, %v774
          %776 = vdwg.mxu0
          %v777 = vmul.f32 %v698, %v486
          %v778 = vmul.f32 %v700, %v487
          %v779 = vmul.f32 %v703, %v488
          %v780 = vmul.f32 %v705, %v489
          %v781 = vmul.f32 %v708, %v490
          %v782 = vmul.f32 %v710, %v491
          %v783 = vmul.f32 %v713, %v492
          %v784 = vmul.f32 %v715, %v493
          %v785 = vmul.f32 %v718, %v494
          %v786 = vmul.f32 %v720, %v495
          %v787 = vmul.f32 %v723, %v496
          %v788 = vmul.f32 %v725, %v497
          %v789 = vmul.f32 %v728, %v498
          %v790 = vmul.f32 %v730, %v499
          %v791 = vmul.f32 %v733, %v500
          %v792 = vmul.f32 %v735, %v501
          %v793 = vmul.f32 %v738, %v502
          %v794 = vmul.f32 %v740, %v503
          %v795 = vmul.f32 %v743, %v504
          %v796 = vmul.f32 %v745, %v505
          %v797 = vmul.f32 %v748, %v506
          %v798 = vmul.f32 %v750, %v507
          %v799 = vmul.f32 %v753, %v508
          %v800 = vmul.f32 %v755, %v509
          %v801 = vmul.f32 %v758, %v510
          %v802 = vmul.f32 %v760, %v511
          %v803 = vmul.f32 %v763, %v512
          %v804 = vmul.f32 %v765, %v513
          %v805 = vmul.f32 %v768, %v514
          %v806 = vmul.f32 %v770, %v515
          %v807 = vmul.f32 %v773, %v516
          %v808 = vmul.f32 %v775, %v517
          %vm809 = vcmask 261120
          %v810 = vsel %vm809, %v777, 0.0
          %v811 = vsel %vm809, %v778, 0.0
          %v812 = vadd.f32 %v810, %v811
          %v813 = vsel %vm809, %v779, 0.0
          %v814 = vadd.f32 %v812, %v813
          %v815 = vsel %vm809, %v780, 0.0
          %v816 = vadd.f32 %v814, %v815
          %v817 = vsel %vm809, %v781, 0.0
          %v818 = vadd.f32 %v816, %v817
          %v819 = vsel %vm809, %v782, 0.0
          %v820 = vadd.f32 %v818, %v819
          %v821 = vsel %vm809, %v783, 0.0
          %v822 = vadd.f32 %v820, %v821
          %v823 = vsel %vm809, %v784, 0.0
          %v824 = vadd.f32 %v822, %v823
          %v825 = vsel %vm809, %v785, 0.0
          %v826 = vadd.f32 %v824, %v825
          %v827 = vsel %vm809, %v786, 0.0
          %v828 = vadd.f32 %v826, %v827
          %v829 = vsel %vm809, %v787, 0.0
          %v830 = vadd.f32 %v828, %v829
          %v831 = vsel %vm809, %v788, 0.0
          %v832 = vadd.f32 %v830, %v831
          %v833 = vsel %vm809, %v789, 0.0
          %v834 = vadd.f32 %v832, %v833
          %v835 = vsel %vm809, %v790, 0.0
          %v836 = vadd.f32 %v834, %v835
          %v837 = vsel %vm809, %v791, 0.0
          %v838 = vadd.f32 %v836, %v837
          %v839 = vsel %vm809, %v792, 0.0
          %v840 = vadd.f32 %v838, %v839
          %v841 = vsel %vm809, %v793, 0.0
          %v842 = vadd.f32 %v840, %v841
          %v843 = vsel %vm809, %v794, 0.0
          %v844 = vadd.f32 %v842, %v843
          %v845 = vsel %vm809, %v795, 0.0
          %v846 = vadd.f32 %v844, %v845
          %v847 = vsel %vm809, %v796, 0.0
          %v848 = vadd.f32 %v846, %v847
          %v849 = vsel %vm809, %v797, 0.0
          %v850 = vadd.f32 %v848, %v849
          %v851 = vsel %vm809, %v798, 0.0
          %v852 = vadd.f32 %v850, %v851
          %v853 = vsel %vm809, %v799, 0.0
          %v854 = vadd.f32 %v852, %v853
          %v855 = vsel %vm809, %v800, 0.0
          %v856 = vadd.f32 %v854, %v855
          %v857 = vsel %vm809, %v801, 0.0
          %v858 = vadd.f32 %v856, %v857
          %v859 = vsel %vm809, %v802, 0.0
          %v860 = vadd.f32 %v858, %v859
          %v861 = vsel %vm809, %v803, 0.0
          %v862 = vadd.f32 %v860, %v861
          %v863 = vsel %vm809, %v804, 0.0
          %v864 = vadd.f32 %v862, %v863
          %v865 = vsel %vm809, %v805, 0.0
          %v866 = vadd.f32 %v864, %v865
          %v867 = vsel %vm809, %v806, 0.0
          %v868 = vadd.f32 %v866, %v867
          %v869 = vsel %vm809, %v807, 0.0
          %v870 = vadd.f32 %v868, %v869
          %v871 = vsel %vm809, %v808, 0.0
          %v872 = vadd.f32 %v870, %v871
          %v873 = vrot.slane %v872, 4
          %v874 = vadd.f32 %v872, %v873
          %v875 = vrot.slane %v874, 2
          %v876 = vadd.f32 %v874, %v875
          %v877 = vrot.slane %v876, 1
          %v878 = vadd.f32 %v876, %v877
          %v879 = vmul.f32 %v777, %v698
          %v880 = vmul.f32 %v778, %v700
          %v881 = vmul.f32 %v779, %v703
          %v882 = vmul.f32 %v780, %v705
          %v883 = vmul.f32 %v781, %v708
          %v884 = vmul.f32 %v782, %v710
          %v885 = vmul.f32 %v783, %v713
          %v886 = vmul.f32 %v784, %v715
          %v887 = vmul.f32 %v785, %v718
          %v888 = vmul.f32 %v786, %v720
          %v889 = vmul.f32 %v787, %v723
          %v890 = vmul.f32 %v788, %v725
          %v891 = vmul.f32 %v789, %v728
          %v892 = vmul.f32 %v790, %v730
          %v893 = vmul.f32 %v791, %v733
          %v894 = vmul.f32 %v792, %v735
          %v895 = vmul.f32 %v793, %v738
          %v896 = vmul.f32 %v794, %v740
          %v897 = vmul.f32 %v795, %v743
          %v898 = vmul.f32 %v796, %v745
          %v899 = vmul.f32 %v797, %v748
          %v900 = vmul.f32 %v798, %v750
          %v901 = vmul.f32 %v799, %v753
          %v902 = vmul.f32 %v800, %v755
          %v903 = vmul.f32 %v801, %v758
          %v904 = vmul.f32 %v802, %v760
          %v905 = vmul.f32 %v803, %v763
          %v906 = vmul.f32 %v804, %v765
          %v907 = vmul.f32 %v805, %v768
          %v908 = vmul.f32 %v806, %v770
          %v909 = vmul.f32 %v807, %v773
          %v910 = vmul.f32 %v808, %v775
          %v911 = vsel %vm809, %v879, 0.0
          %v912 = vsel %vm809, %v880, 0.0
          %v913 = vadd.f32 %v911, %v912
          %v914 = vsel %vm809, %v881, 0.0
          %v915 = vadd.f32 %v913, %v914
          %v916 = vsel %vm809, %v882, 0.0
          %v917 = vadd.f32 %v915, %v916
          %v918 = vsel %vm809, %v883, 0.0
          %v919 = vadd.f32 %v917, %v918
          %v920 = vsel %vm809, %v884, 0.0
          %v921 = vadd.f32 %v919, %v920
          %v922 = vsel %vm809, %v885, 0.0
          %v923 = vadd.f32 %v921, %v922
          %v924 = vsel %vm809, %v886, 0.0
          %v925 = vadd.f32 %v923, %v924
          %v926 = vsel %vm809, %v887, 0.0
          %v927 = vadd.f32 %v925, %v926
          %v928 = vsel %vm809, %v888, 0.0
          %v929 = vadd.f32 %v927, %v928
          %v930 = vsel %vm809, %v889, 0.0
          %v931 = vadd.f32 %v929, %v930
          %v932 = vsel %vm809, %v890, 0.0
          %v933 = vadd.f32 %v931, %v932
          %v934 = vsel %vm809, %v891, 0.0
          %v935 = vadd.f32 %v933, %v934
          %v936 = vsel %vm809, %v892, 0.0
          %v937 = vadd.f32 %v935, %v936
          %v938 = vsel %vm809, %v893, 0.0
          %v939 = vadd.f32 %v937, %v938
          %v940 = vsel %vm809, %v894, 0.0
          %v941 = vadd.f32 %v939, %v940
          %v942 = vsel %vm809, %v895, 0.0
          %v943 = vadd.f32 %v941, %v942
          %v944 = vsel %vm809, %v896, 0.0
          %v945 = vadd.f32 %v943, %v944
          %v946 = vsel %vm809, %v897, 0.0
          %v947 = vadd.f32 %v945, %v946
          %v948 = vsel %vm809, %v898, 0.0
          %v949 = vadd.f32 %v947, %v948
          %v950 = vsel %vm809, %v899, 0.0
          %v951 = vadd.f32 %v949, %v950
          %v952 = vsel %vm809, %v900, 0.0
          %v953 = vadd.f32 %v951, %v952
          %v954 = vsel %vm809, %v901, 0.0
          %v955 = vadd.f32 %v953, %v954
          %v956 = vsel %vm809, %v902, 0.0
          %v957 = vadd.f32 %v955, %v956
          %v958 = vsel %vm809, %v903, 0.0
          %v959 = vadd.f32 %v957, %v958
          %v960 = vsel %vm809, %v904, 0.0
          %v961 = vadd.f32 %v959, %v960
          %v962 = vsel %vm809, %v905, 0.0
          %v963 = vadd.f32 %v961, %v962
          %v964 = vsel %vm809, %v906, 0.0
          %v965 = vadd.f32 %v963, %v964
          %v966 = vsel %vm809, %v907, 0.0
          %v967 = vadd.f32 %v965, %v966
          %v968 = vsel %vm809, %v908, 0.0
          %v969 = vadd.f32 %v967, %v968
          %v970 = vsel %vm809, %v909, 0.0
          %v971 = vadd.f32 %v969, %v970
          %v972 = vsel %vm809, %v910, 0.0
          %v973 = vadd.f32 %v971, %v972
          %v974 = vrot.slane %v973, 4
          %v975 = vadd.f32 %v973, %v974
          %v976 = vrot.slane %v975, 2
          %v977 = vadd.f32 %v975, %v976
          %v978 = vrot.slane %v977, 1
          %v979 = vadd.f32 %v977, %v978
          %p980 = scmp.eq.s32.totalorder %s30, 0
          // Predicated region
          $region53: #{tpu_custom_call.1} parent=51 // pred_check
            %p981 = pneg %p980
          $region54: #{tpu_custom_call.1} parent=51 // pred_check_branch
            %983 = sbr.rel (%p981) target = $region56
          $region55: #{tpu_custom_call.1} parent=51 // pred_region
            %vm984 = vcmask 253952
            %985 = vst.msk [vmem:[#allocation3] sm:$0x1] %vm984, %v878
            %986 = vst.msk [vmem:[#allocation4] sm:$0x1] %vm984, %v979
          $region56: #{tpu_custom_call.1} parent=51 // pred_fallthru
            _
          %p987 = scmp.gt.s32.totalorder %s30, 0
          // Predicated region
          $region57: #{tpu_custom_call.1} parent=51 // pred_check
            %p988 = pneg %p987
          $region58: #{tpu_custom_call.1} parent=51 // pred_check_branch
            %990 = sbr.rel (%p988) target = $region60
          $region59: #{tpu_custom_call.1} parent=51 // pred_region
            %v991 = vld [vmem:[#allocation3] sm:$0x1]
            %v992 = vadd.f32 %v991, %v878
            %vm993 = vcmask 253952
            %994 = vst.msk [vmem:[#allocation3] sm:$0x1] %vm993, %v992
            %v995 = vld [vmem:[#allocation4] sm:$0x1]
            %v996 = vadd.f32 %v995, %v979
            %997 = vst.msk [vmem:[#allocation4] sm:$0x1] %vm993, %v996
          $region60: #{tpu_custom_call.1} parent=51 // pred_fallthru
            _
          // Predicated region
          $region61: #{tpu_custom_call.1} parent=51 // pred_check
            %p998 = pneg %p980
          $region62: #{tpu_custom_call.1} parent=51 // pred_check_branch
            %1000 = sbr.rel (%p998) target = $region64
          $region63: #{tpu_custom_call.1} parent=51 // pred_region
            %v1001 = vld [vmem:[#allocation3] sm:$0x1]
            %v1002 = vmul.f32 %v1001, 0.00390625
            %v1003 = vld [vmem:[#allocation4] sm:$0x1]
            %v1004 = vmul.f32 %v1003, 0.00390625
            %v1005 = vmul.f32 %v1002, %v1002
            %v1006 = vsub.f32 %v1004, %v1005
            %v1007 = vmax.f32 %v1006, 0.0
            %v1008 = vadd.f32 %v1007, 1e-05
            %v1009 = vrsqrt.pop %v1008
            %v1010 = vmul.f32 %v1009, %v1008
            %v1011 = vmul.f32 %v1010, %v1009
            %v1012 = vmul.f32 0.5, %v1011
            %v1013 = vsub.f32 1.5, %v1012
            %v1014 = vmul.f32 %v1009, %v1013
            %vm1015 = vweird.f32 %v1008
            %vm1016 = vweird.f32 %v1009
            %vm1017 = vmor %vm1015, %vm1016
            %v1018 = vsel %vm1017, %v1009, %v1014
            %v1019 = vld [vmem:[%s3] sm:$0x1]
            %v1020 = vmul.f32 %v1019, %v1018
            %vm1021 = vcmask 253952
            %1022 = vst.msk [vmem:[#allocation7] sm:$0x1] %vm1021, %v1020
            %v1023 = vld [vmem:[%s5] sm:$0x1]
            %v1024 = vmul.f32 %v1002, %v1020
            %v1025 = vsub.f32 %v1023, %v1024
            %1026 = vst.msk [vmem:[#allocation11] sm:$0x1] %vm1021, %v1025
          $region64: #{tpu_custom_call.1} parent=51 // pred_fallthru
            _
        $region52: #{tpu_custom_call.1} parent=47 // pred_fallthru
          _
        %p1027 = scmp.gt.s32.totalorder %s29, 0
        // Predicated region
        $region65: #{tpu_custom_call.1} parent=47 // pred_check
          %p1028 = pneg %p1027
        $region66: #{tpu_custom_call.1} parent=47 // pred_check_branch
          %1030 = sbr.rel (%p1028) target = $region68
        $region67: #{tpu_custom_call.1} parent=47 // pred_region
          %v1031 = vld [vmem:[%s352] sm:$0xf]
          %v1032 = vld [vmem:[%s352 + $0x4] sm:$0xf]
          %v1033 = vld [vmem:[%s352 + $0x8] sm:$0xf]
          %v1034 = vld [vmem:[%s352 + $0xc] sm:$0xf]
          %v1035 = vld [vmem:[%s352 + $0x10] sm:$0xf]
          %v1036 = vld [vmem:[%s352 + $0x14] sm:$0xf]
          %v1037 = vld [vmem:[%s352 + $0x18] sm:$0xf]
          %v1038 = vld [vmem:[%s352 + $0x1c] sm:$0xf]
          %v1039 = vld [vmem:[%s352 + $0x20] sm:$0xf]
          %v1040 = vld [vmem:[%s352 + $0x24] sm:$0xf]
          %v1041 = vld [vmem:[%s352 + $0x28] sm:$0xf]
          %v1042 = vld [vmem:[%s352 + $0x2c] sm:$0xf]
          %v1043 = vld [vmem:[%s352 + $0x30] sm:$0xf]
          %v1044 = vld [vmem:[%s352 + $0x34] sm:$0xf]
          %v1045 = vld [vmem:[%s352 + $0x38] sm:$0xf]
          %v1046 = vld [vmem:[%s352 + $0x3c] sm:$0xf]
          %v1047 = vld [vmem:[%s352 + $0x40] sm:$0xf]
          %v1048 = vld [vmem:[%s352 + $0x44] sm:$0xf]
          %v1049 = vld [vmem:[%s352 + $0x48] sm:$0xf]
          %v1050 = vld [vmem:[%s352 + $0x4c] sm:$0xf]
          %v1051 = vld [vmem:[%s352 + $0x50] sm:$0xf]
          %v1052 = vld [vmem:[%s352 + $0x54] sm:$0xf]
          %v1053 = vld [vmem:[%s352 + $0x58] sm:$0xf]
          %v1054 = vld [vmem:[%s352 + $0x5c] sm:$0xf]
          %v1055 = vld [vmem:[%s352 + $0x60] sm:$0xf]
          %v1056 = vld [vmem:[%s352 + $0x64] sm:$0xf]
          %v1057 = vld [vmem:[%s352 + $0x68] sm:$0xf]
          %v1058 = vld [vmem:[%s352 + $0x6c] sm:$0xf]
          %v1059 = vld [vmem:[%s352 + $0x70] sm:$0xf]
          %v1060 = vld [vmem:[%s352 + $0x74] sm:$0xf]
          %v1061 = vld [vmem:[%s352 + $0x78] sm:$0xf]
          %v1062 = vld [vmem:[%s352 + $0x7c] sm:$0xf]
          %v1063 = vld [vmem:[%s1] sm:$0x3]
          %v1096 = vunpack.c.l.b16 %v1031
          %v1097 = vunpack.c.l.b16 %v1032
          %v1098 = vunpack.c.l.b16 %v1033
          %v1099 = vunpack.c.l.b16 %v1034
          %v1100 = vunpack.c.l.b16 %v1035
          %v1101 = vunpack.c.l.b16 %v1036
          %v1102 = vunpack.c.l.b16 %v1037
          %v1103 = vunpack.c.l.b16 %v1038
          %v1104 = vunpack.c.l.b16 %v1039
          %v1105 = vunpack.c.l.b16 %v1040
          %v1106 = vunpack.c.l.b16 %v1041
          %v1107 = vunpack.c.l.b16 %v1042
          %v1108 = vunpack.c.l.b16 %v1043
          %v1109 = vunpack.c.l.b16 %v1044
          %v1110 = vunpack.c.l.b16 %v1045
          %v1111 = vunpack.c.l.b16 %v1046
          %v1112 = vunpack.c.l.b16 %v1047
          %v1113 = vunpack.c.l.b16 %v1048
          %v1114 = vunpack.c.l.b16 %v1049
          %v1115 = vunpack.c.l.b16 %v1050
          %v1116 = vunpack.c.l.b16 %v1051
          %v1117 = vunpack.c.l.b16 %v1052
          %v1118 = vunpack.c.l.b16 %v1053
          %v1119 = vunpack.c.l.b16 %v1054
          %v1120 = vunpack.c.l.b16 %v1055
          %v1121 = vunpack.c.l.b16 %v1056
          %v1122 = vunpack.c.l.b16 %v1057
          %v1123 = vunpack.c.l.b16 %v1058
          %v1124 = vunpack.c.l.b16 %v1059
          %v1125 = vunpack.c.l.b16 %v1060
          %v1126 = vunpack.c.l.b16 %v1061
          %v1127 = vunpack.c.l.b16 %v1062
          %v1128 = vpack.c.b16 %v1097, %v1096
          %v1129 = vpack.c.b16 %v1099, %v1098
          %v1130 = vpack.c.b16 %v1101, %v1100
          %v1131 = vpack.c.b16 %v1103, %v1102
          %v1132 = vpack.c.b16 %v1105, %v1104
          %v1133 = vpack.c.b16 %v1107, %v1106
          %v1134 = vpack.c.b16 %v1109, %v1108
          %v1135 = vpack.c.b16 %v1111, %v1110
          %v1136 = vpack.c.b16 %v1113, %v1112
          %v1137 = vpack.c.b16 %v1115, %v1114
          %v1138 = vpack.c.b16 %v1117, %v1116
          %v1139 = vpack.c.b16 %v1119, %v1118
          %v1140 = vpack.c.b16 %v1121, %v1120
          %v1141 = vpack.c.b16 %v1123, %v1122
          %v1142 = vpack.c.b16 %v1125, %v1124
          %v1143 = vpack.c.b16 %v1127, %v1126
          %vm1144 = vcmask 31744
          %v1146 = vsel %vm1144, %v1128, 0
          %v1149 = vsel %vm1144, %v1129, 0
          %v1152 = vsel %vm1144, %v1130, 0
          %v1155 = vsel %vm1144, %v1131, 0
          %v1158 = vsel %vm1144, %v1132, 0
          %v1161 = vsel %vm1144, %v1133, 0
          %v1164 = vsel %vm1144, %v1134, 0
          %v1167 = vsel %vm1144, %v1135, 0
          %v1170 = vsel %vm1144, %v1136, 0
          %v1173 = vsel %vm1144, %v1137, 0
          %v1176 = vsel %vm1144, %v1138, 0
          %v1179 = vsel %vm1144, %v1139, 0
          %v1182 = vsel %vm1144, %v1140, 0
          %v1185 = vsel %vm1144, %v1141, 0
          %v1188 = vsel %vm1144, %v1142, 0
          %v1191 = vsel %vm1144, %v1143, 0
          %vm1193 = vcmask 1041408
          %v1195 = vsel %vm1193, %v1063, 0
          %1197 = vmatpush.bf16.msra.mxu0 0
          %1198 = vmatpush.bf16.msra.mxu0 0
          %1199 = vmatpush.bf16.msra.mxu0 0
          %1200 = vmatpush.bf16.msra.mxu0 0
          %1201 = vmatpush.bf16.msra.mxu0 0
          %1202 = vmatpush.bf16.msra.mxu0 0
          %1203 = vmatpush.bf16.msra.mxu0 0
          %1204 = vmatpush.bf16.msra.mxu0 %v1195
          %1205 = vmatmul.bf16.gmra.mxu0 %v1146
          %v1206 = vpop.f32.mrf.mxu0
          %v1207 = vadd.f32 0.0, %v1206
          %v1208 = vpop.f32.mrf.mxu0
          %v1209 = vadd.f32 0.0, %v1208
          %1210 = vmatmul.bf16.gmra.mxu0 %v1149
          %v1211 = vpop.f32.mrf.mxu0
          %v1212 = vadd.f32 0.0, %v1211
          %v1213 = vpop.f32.mrf.mxu0
          %v1214 = vadd.f32 0.0, %v1213
          %1215 = vmatmul.bf16.gmra.mxu0 %v1152
          %v1216 = vpop.f32.mrf.mxu0
          %v1217 = vadd.f32 0.0, %v1216
          %v1218 = vpop.f32.mrf.mxu0
          %v1219 = vadd.f32 0.0, %v1218
          %1220 = vmatmul.bf16.gmra.mxu0 %v1155
          %v1221 = vpop.f32.mrf.mxu0
          %v1222 = vadd.f32 0.0, %v1221
          %v1223 = vpop.f32.mrf.mxu0
          %v1224 = vadd.f32 0.0, %v1223
          %1225 = vmatmul.bf16.gmra.mxu0 %v1158
          %v1226 = vpop.f32.mrf.mxu0
          %v1227 = vadd.f32 0.0, %v1226
          %v1228 = vpop.f32.mrf.mxu0
          %v1229 = vadd.f32 0.0, %v1228
          %1230 = vmatmul.bf16.gmra.mxu0 %v1161
          %v1231 = vpop.f32.mrf.mxu0
          %v1232 = vadd.f32 0.0, %v1231
          %v1233 = vpop.f32.mrf.mxu0
          %v1234 = vadd.f32 0.0, %v1233
          %1235 = vmatmul.bf16.gmra.mxu0 %v1164
          %v1236 = vpop.f32.mrf.mxu0
          %v1237 = vadd.f32 0.0, %v1236
          %v1238 = vpop.f32.mrf.mxu0
          %v1239 = vadd.f32 0.0, %v1238
          %1240 = vmatmul.bf16.gmra.mxu0 %v1167
          %v1241 = vpop.f32.mrf.mxu0
          %v1242 = vadd.f32 0.0, %v1241
          %v1243 = vpop.f32.mrf.mxu0
          %v1244 = vadd.f32 0.0, %v1243
          %1245 = vmatmul.bf16.gmra.mxu0 %v1170
          %v1246 = vpop.f32.mrf.mxu0
          %v1247 = vadd.f32 0.0, %v1246
          %v1248 = vpop.f32.mrf.mxu0
          %v1249 = vadd.f32 0.0, %v1248
          %1250 = vmatmul.bf16.gmra.mxu0 %v1173
          %v1251 = vpop.f32.mrf.mxu0
          %v1252 = vadd.f32 0.0, %v1251
          %v1253 = vpop.f32.mrf.mxu0
          %v1254 = vadd.f32 0.0, %v1253
          %1255 = vmatmul.bf16.gmra.mxu0 %v1176
          %v1256 = vpop.f32.mrf.mxu0
          %v1257 = vadd.f32 0.0, %v1256
          %v1258 = vpop.f32.mrf.mxu0
          %v1259 = vadd.f32 0.0, %v1258
          %1260 = vmatmul.bf16.gmra.mxu0 %v1179
          %v1261 = vpop.f32.mrf.mxu0
          %v1262 = vadd.f32 0.0, %v1261
          %v1263 = vpop.f32.mrf.mxu0
          %v1264 = vadd.f32 0.0, %v1263
          %1265 = vmatmul.bf16.gmra.mxu0 %v1182
          %v1266 = vpop.f32.mrf.mxu0
          %v1267 = vadd.f32 0.0, %v1266
          %v1268 = vpop.f32.mrf.mxu0
          %v1269 = vadd.f32 0.0, %v1268
          %1270 = vmatmul.bf16.gmra.mxu0 %v1185
          %v1271 = vpop.f32.mrf.mxu0
          %v1272 = vadd.f32 0.0, %v1271
          %v1273 = vpop.f32.mrf.mxu0
          %v1274 = vadd.f32 0.0, %v1273
          %1275 = vmatmul.bf16.gmra.mxu0 %v1188
          %v1276 = vpop.f32.mrf.mxu0
          %v1277 = vadd.f32 0.0, %v1276
          %v1278 = vpop.f32.mrf.mxu0
          %v1279 = vadd.f32 0.0, %v1278
          %1280 = vmatmul.bf16.gmra.mxu0 %v1191
          %v1281 = vpop.f32.mrf.mxu0
          %v1282 = vadd.f32 0.0, %v1281
          %v1283 = vpop.f32.mrf.mxu0
          %v1284 = vadd.f32 0.0, %v1283
          %1285 = vdwg.mxu0
          %v1286 = vld [vmem:[#allocation7] sm:$0x1]
          %v1288 = vperm.slane %v1286, 0
          %v1290 = vmul.f32 %v1207, %v1288
          %v1291 = vmul.f32 %v1209, %v1288
          %v1292 = vmul.f32 %v1212, %v1288
          %v1293 = vmul.f32 %v1214, %v1288
          %v1294 = vmul.f32 %v1217, %v1288
          %v1295 = vmul.f32 %v1219, %v1288
          %v1296 = vmul.f32 %v1222, %v1288
          %v1297 = vmul.f32 %v1224, %v1288
          %v1298 = vmul.f32 %v1227, %v1288
          %v1299 = vmul.f32 %v1229, %v1288
          %v1300 = vmul.f32 %v1232, %v1288
          %v1301 = vmul.f32 %v1234, %v1288
          %v1302 = vmul.f32 %v1237, %v1288
          %v1303 = vmul.f32 %v1239, %v1288
          %v1304 = vmul.f32 %v1242, %v1288
          %v1305 = vmul.f32 %v1244, %v1288
          %v1306 = vmul.f32 %v1247, %v1288
          %v1307 = vmul.f32 %v1249, %v1288
          %v1308 = vmul.f32 %v1252, %v1288
          %v1309 = vmul.f32 %v1254, %v1288
          %v1310 = vmul.f32 %v1257, %v1288
          %v1311 = vmul.f32 %v1259, %v1288
          %v1312 = vmul.f32 %v1262, %v1288
          %v1313 = vmul.f32 %v1264, %v1288
          %v1314 = vmul.f32 %v1267, %v1288
          %v1315 = vmul.f32 %v1269, %v1288
          %v1316 = vmul.f32 %v1272, %v1288
          %v1317 = vmul.f32 %v1274, %v1288
          %v1318 = vmul.f32 %v1277, %v1288
          %v1319 = vmul.f32 %v1279, %v1288
          %v1320 = vmul.f32 %v1282, %v1288
          %v1321 = vmul.f32 %v1284, %v1288
          %v1322 = vld [vmem:[#allocation11] sm:$0x1]
          %v1324 = vperm.slane %v1322, 0
          %v1326 = vadd.f32 %v1290, %v1324
          %v1327 = vadd.f32 %v1291, %v1324
          %v1328 = vadd.f32 %v1292, %v1324
          %v1329 = vadd.f32 %v1293, %v1324
          %v1330 = vadd.f32 %v1294, %v1324
          %v1331 = vadd.f32 %v1295, %v1324
          %v1332 = vadd.f32 %v1296, %v1324
          %v1333 = vadd.f32 %v1297, %v1324
          %v1334 = vadd.f32 %v1298, %v1324
          %v1335 = vadd.f32 %v1299, %v1324
          %v1336 = vadd.f32 %v1300, %v1324
          %v1337 = vadd.f32 %v1301, %v1324
          %v1338 = vadd.f32 %v1302, %v1324
          %v1339 = vadd.f32 %v1303, %v1324
          %v1340 = vadd.f32 %v1304, %v1324
          %v1341 = vadd.f32 %v1305, %v1324
          %v1342 = vadd.f32 %v1306, %v1324
          %v1343 = vadd.f32 %v1307, %v1324
          %v1344 = vadd.f32 %v1308, %v1324
          %v1345 = vadd.f32 %v1309, %v1324
          %v1346 = vadd.f32 %v1310, %v1324
          %v1347 = vadd.f32 %v1311, %v1324
          %v1348 = vadd.f32 %v1312, %v1324
          %v1349 = vadd.f32 %v1313, %v1324
          %v1350 = vadd.f32 %v1314, %v1324
          %v1351 = vadd.f32 %v1315, %v1324
          %v1352 = vadd.f32 %v1316, %v1324
          %v1353 = vadd.f32 %v1317, %v1324
          %v1354 = vadd.f32 %v1318, %v1324
          %v1355 = vadd.f32 %v1319, %v1324
          %v1356 = vadd.f32 %v1320, %v1324
          %v1357 = vadd.f32 %v1321, %v1324
          %v1358 = vmax.f32 %v1326, 0.0
          %v1359 = vmax.f32 %v1327, 0.0
          %v1360 = vmax.f32 %v1328, 0.0
          %v1361 = vmax.f32 %v1329, 0.0
          %v1362 = vmax.f32 %v1330, 0.0
          %v1363 = vmax.f32 %v1331, 0.0
          %v1364 = vmax.f32 %v1332, 0.0
          %v1365 = vmax.f32 %v1333, 0.0
          %v1366 = vmax.f32 %v1334, 0.0
          %v1367 = vmax.f32 %v1335, 0.0
          %v1368 = vmax.f32 %v1336, 0.0
          %v1369 = vmax.f32 %v1337, 0.0
          %v1370 = vmax.f32 %v1338, 0.0
          %v1371 = vmax.f32 %v1339, 0.0
          %v1372 = vmax.f32 %v1340, 0.0
          %v1373 = vmax.f32 %v1341, 0.0
          %v1374 = vmax.f32 %v1342, 0.0
          %v1375 = vmax.f32 %v1343, 0.0
          %v1376 = vmax.f32 %v1344, 0.0
          %v1377 = vmax.f32 %v1345, 0.0
          %v1378 = vmax.f32 %v1346, 0.0
          %v1379 = vmax.f32 %v1347, 0.0
          %v1380 = vmax.f32 %v1348, 0.0
          %v1381 = vmax.f32 %v1349, 0.0
          %v1382 = vmax.f32 %v1350, 0.0
          %v1383 = vmax.f32 %v1351, 0.0
          %v1384 = vmax.f32 %v1352, 0.0
          %v1385 = vmax.f32 %v1353, 0.0
          %v1386 = vmax.f32 %v1354, 0.0
          %v1387 = vmax.f32 %v1355, 0.0
          %v1388 = vmax.f32 %v1356, 0.0
          %v1389 = vmax.f32 %v1357, 0.0
          %v1390 = vpack.c.bf16 %v1358, %v1358
          %v1391 = vpack.c.bf16 %v1359, %v1359
          %v1392 = vpack.c.bf16 %v1360, %v1360
          %v1393 = vpack.c.bf16 %v1361, %v1361
          %v1394 = vpack.c.bf16 %v1362, %v1362
          %v1395 = vpack.c.bf16 %v1363, %v1363
          %v1396 = vpack.c.bf16 %v1364, %v1364
          %v1397 = vpack.c.bf16 %v1365, %v1365
          %v1398 = vpack.c.bf16 %v1366, %v1366
          %v1399 = vpack.c.bf16 %v1367, %v1367
          %v1400 = vpack.c.bf16 %v1368, %v1368
          %v1401 = vpack.c.bf16 %v1369, %v1369
          %v1402 = vpack.c.bf16 %v1370, %v1370
          %v1403 = vpack.c.bf16 %v1371, %v1371
          %v1404 = vpack.c.bf16 %v1372, %v1372
          %v1405 = vpack.c.bf16 %v1373, %v1373
          %v1406 = vpack.c.bf16 %v1374, %v1374
          %v1407 = vpack.c.bf16 %v1375, %v1375
          %v1408 = vpack.c.bf16 %v1376, %v1376
          %v1409 = vpack.c.bf16 %v1377, %v1377
          %v1410 = vpack.c.bf16 %v1378, %v1378
          %v1411 = vpack.c.bf16 %v1379, %v1379
          %v1412 = vpack.c.bf16 %v1380, %v1380
          %v1413 = vpack.c.bf16 %v1381, %v1381
          %v1414 = vpack.c.bf16 %v1382, %v1382
          %v1415 = vpack.c.bf16 %v1383, %v1383
          %v1416 = vpack.c.bf16 %v1384, %v1384
          %v1417 = vpack.c.bf16 %v1385, %v1385
          %v1418 = vpack.c.bf16 %v1386, %v1386
          %v1419 = vpack.c.bf16 %v1387, %v1387
          %v1420 = vpack.c.bf16 %v1388, %v1388
          %v1421 = vpack.c.bf16 %v1389, %v1389
          %vm1422 = vcmask 257024
          %1423 = vst.msk [vmem:[#allocation2] sm:$0xf] %vm1422, %v1390
          %1424 = vst.msk [vmem:[#allocation2 + $0x4] sm:$0xf] %vm1422, %v1391
          %1425 = vst.msk [vmem:[#allocation2 + $0x8] sm:$0xf] %vm1422, %v1392
          %1426 = vst.msk [vmem:[#allocation2 + $0xc] sm:$0xf] %vm1422, %v1393
          %1427 = vst.msk [vmem:[#allocation2 + $0x10] sm:$0xf] %vm1422, %v1394
          %1428 = vst.msk [vmem:[#allocation2 + $0x14] sm:$0xf] %vm1422, %v1395
          %1429 = vst.msk [vmem:[#allocation2 + $0x18] sm:$0xf] %vm1422, %v1396
          %1430 = vst.msk [vmem:[#allocation2 + $0x1c] sm:$0xf] %vm1422, %v1397
          %1431 = vst.msk [vmem:[#allocation2 + $0x20] sm:$0xf] %vm1422, %v1398
          %1432 = vst.msk [vmem:[#allocation2 + $0x24] sm:$0xf] %vm1422, %v1399
          %1433 = vst.msk [vmem:[#allocation2 + $0x28] sm:$0xf] %vm1422, %v1400
          %1434 = vst.msk [vmem:[#allocation2 + $0x2c] sm:$0xf] %vm1422, %v1401
          %1435 = vst.msk [vmem:[#allocation2 + $0x30] sm:$0xf] %vm1422, %v1402
          %1436 = vst.msk [vmem:[#allocation2 + $0x34] sm:$0xf] %vm1422, %v1403
          %1437 = vst.msk [vmem:[#allocation2 + $0x38] sm:$0xf] %vm1422, %v1404
          %1438 = vst.msk [vmem:[#allocation2 + $0x3c] sm:$0xf] %vm1422, %v1405
          %1439 = vst.msk [vmem:[#allocation2 + $0x40] sm:$0xf] %vm1422, %v1406
          %1440 = vst.msk [vmem:[#allocation2 + $0x44] sm:$0xf] %vm1422, %v1407
          %1441 = vst.msk [vmem:[#allocation2 + $0x48] sm:$0xf] %vm1422, %v1408
          %1442 = vst.msk [vmem:[#allocation2 + $0x4c] sm:$0xf] %vm1422, %v1409
          %1443 = vst.msk [vmem:[#allocation2 + $0x50] sm:$0xf] %vm1422, %v1410
          %1444 = vst.msk [vmem:[#allocation2 + $0x54] sm:$0xf] %vm1422, %v1411
          %1445 = vst.msk [vmem:[#allocation2 + $0x58] sm:$0xf] %vm1422, %v1412
          %1446 = vst.msk [vmem:[#allocation2 + $0x5c] sm:$0xf] %vm1422, %v1413
          %1447 = vst.msk [vmem:[#allocation2 + $0x60] sm:$0xf] %vm1422, %v1414
          %1448 = vst.msk [vmem:[#allocation2 + $0x64] sm:$0xf] %vm1422, %v1415
          %1449 = vst.msk [vmem:[#allocation2 + $0x68] sm:$0xf] %vm1422, %v1416
          %1450 = vst.msk [vmem:[#allocation2 + $0x6c] sm:$0xf] %vm1422, %v1417
          %1451 = vst.msk [vmem:[#allocation2 + $0x70] sm:$0xf] %vm1422, %v1418
          %1452 = vst.msk [vmem:[#allocation2 + $0x74] sm:$0xf] %vm1422, %v1419
          %1453 = vst.msk [vmem:[#allocation2 + $0x78] sm:$0xf] %vm1422, %v1420
          %1454 = vst.msk [vmem:[#allocation2 + $0x7c] sm:$0xf] %vm1422, %v1421
        $region68: #{tpu_custom_call.1} parent=47 // pred_fallthru
          _
        %p1455 = scmp.eq.s32.totalorder %s29, 1
        // Predicated region
        $region69: #{tpu_custom_call.1} parent=47 // pred_check
          %p1456 = pneg %p1455
        $region70: #{tpu_custom_call.1} parent=47 // pred_check_branch
          %1458 = sbr.rel (%p1456) target = $region72
        $region71: #{tpu_custom_call.1} parent=47 // pred_region
          %v1459 = vld [vmem:[#allocation2] sm:$0xf]
          %v1460 = vld [vmem:[#allocation2 + $0x4] sm:$0xf]
          %v1461 = vld [vmem:[#allocation2 + $0x8] sm:$0xf]
          %v1462 = vld [vmem:[#allocation2 + $0xc] sm:$0xf]
          %v1463 = vld [vmem:[#allocation2 + $0x10] sm:$0xf]
          %v1464 = vld [vmem:[#allocation2 + $0x14] sm:$0xf]
          %v1465 = vld [vmem:[#allocation2 + $0x18] sm:$0xf]
          %v1466 = vld [vmem:[#allocation2 + $0x1c] sm:$0xf]
          %v1467 = vld [vmem:[#allocation2 + $0x20] sm:$0xf]
          %v1468 = vld [vmem:[#allocation2 + $0x24] sm:$0xf]
          %v1469 = vld [vmem:[#allocation2 + $0x28] sm:$0xf]
          %v1470 = vld [vmem:[#allocation2 + $0x2c] sm:$0xf]
          %v1471 = vld [vmem:[#allocation2 + $0x30] sm:$0xf]
          %v1472 = vld [vmem:[#allocation2 + $0x34] sm:$0xf]
          %v1473 = vld [vmem:[#allocation2 + $0x38] sm:$0xf]
          %v1474 = vld [vmem:[#allocation2 + $0x3c] sm:$0xf]
          %v1475 = vld [vmem:[#allocation2 + $0x40] sm:$0xf]
          %v1476 = vld [vmem:[#allocation2 + $0x44] sm:$0xf]
          %v1477 = vld [vmem:[#allocation2 + $0x48] sm:$0xf]
          %v1478 = vld [vmem:[#allocation2 + $0x4c] sm:$0xf]
          %v1479 = vld [vmem:[#allocation2 + $0x50] sm:$0xf]
          %v1480 = vld [vmem:[#allocation2 + $0x54] sm:$0xf]
          %v1481 = vld [vmem:[#allocation2 + $0x58] sm:$0xf]
          %v1482 = vld [vmem:[#allocation2 + $0x5c] sm:$0xf]
          %v1483 = vld [vmem:[#allocation2 + $0x60] sm:$0xf]
          %v1484 = vld [vmem:[#allocation2 + $0x64] sm:$0xf]
          %v1485 = vld [vmem:[#allocation2 + $0x68] sm:$0xf]
          %v1486 = vld [vmem:[#allocation2 + $0x6c] sm:$0xf]
          %v1487 = vld [vmem:[#allocation2 + $0x70] sm:$0xf]
          %v1488 = vld [vmem:[#allocation2 + $0x74] sm:$0xf]
          %v1489 = vld [vmem:[#allocation2 + $0x78] sm:$0xf]
          %v1490 = vld [vmem:[#allocation2 + $0x7c] sm:$0xf]
          %v1491 = vld [vmem:[%s2] sm:$0xf]
          %v1492 = vld [vmem:[%s2 + $0x4] sm:$0xf]
          %v1493 = vld [vmem:[%s2 + $0x8] sm:$0xf]
          %v1494 = vld [vmem:[%s2 + $0xc] sm:$0xf]
          %v1527 = vunpack.c.l.b16 %v1459
          %v1528 = vunpack.c.l.b16 %v1460
          %v1529 = vunpack.c.l.b16 %v1461
          %v1530 = vunpack.c.l.b16 %v1462
          %v1531 = vunpack.c.l.b16 %v1463
          %v1532 = vunpack.c.l.b16 %v1464
          %v1533 = vunpack.c.l.b16 %v1465
          %v1534 = vunpack.c.l.b16 %v1466
          %v1535 = vunpack.c.l.b16 %v1467
          %v1536 = vunpack.c.l.b16 %v1468
          %v1537 = vunpack.c.l.b16 %v1469
          %v1538 = vunpack.c.l.b16 %v1470
          %v1539 = vunpack.c.l.b16 %v1471
          %v1540 = vunpack.c.l.b16 %v1472
          %v1541 = vunpack.c.l.b16 %v1473
          %v1542 = vunpack.c.l.b16 %v1474
          %v1543 = vunpack.c.l.b16 %v1475
          %v1544 = vunpack.c.l.b16 %v1476
          %v1545 = vunpack.c.l.b16 %v1477
          %v1546 = vunpack.c.l.b16 %v1478
          %v1547 = vunpack.c.l.b16 %v1479
          %v1548 = vunpack.c.l.b16 %v1480
          %v1549 = vunpack.c.l.b16 %v1481
          %v1550 = vunpack.c.l.b16 %v1482
          %v1551 = vunpack.c.l.b16 %v1483
          %v1552 = vunpack.c.l.b16 %v1484
          %v1553 = vunpack.c.l.b16 %v1485
          %v1554 = vunpack.c.l.b16 %v1486
          %v1555 = vunpack.c.l.b16 %v1487
          %v1556 = vunpack.c.l.b16 %v1488
          %v1557 = vunpack.c.l.b16 %v1489
          %v1558 = vunpack.c.l.b16 %v1490
          %v1559 = vpack.c.b16 %v1528, %v1527
          %v1560 = vpack.c.b16 %v1530, %v1529
          %v1561 = vpack.c.b16 %v1532, %v1531
          %v1562 = vpack.c.b16 %v1534, %v1533
          %v1563 = vpack.c.b16 %v1536, %v1535
          %v1564 = vpack.c.b16 %v1538, %v1537
          %v1565 = vpack.c.b16 %v1540, %v1539
          %v1566 = vpack.c.b16 %v1542, %v1541
          %v1567 = vpack.c.b16 %v1544, %v1543
          %v1568 = vpack.c.b16 %v1546, %v1545
          %v1569 = vpack.c.b16 %v1548, %v1547
          %v1570 = vpack.c.b16 %v1550, %v1549
          %v1571 = vpack.c.b16 %v1552, %v1551
          %v1572 = vpack.c.b16 %v1554, %v1553
          %v1573 = vpack.c.b16 %v1556, %v1555
          %v1574 = vpack.c.b16 %v1558, %v1557
          %v1579 = vunpack.c.l.b16 %v1491
          %v1580 = vunpack.c.l.b16 %v1492
          %v1581 = vunpack.c.l.b16 %v1493
          %v1582 = vunpack.c.l.b16 %v1494
          %v1583 = vpack.c.b16 %v1580, %v1579
          %v1584 = vpack.c.b16 %v1582, %v1581
          %vm1587 = vcmask 261120
          %v1589 = vsel %vm1587, %v1559, 0
          %v1592 = vsel %vm1587, %v1560, 0
          %v1595 = vsel %vm1587, %v1561, 0
          %v1598 = vsel %vm1587, %v1562, 0
          %v1601 = vsel %vm1587, %v1563, 0
          %v1604 = vsel %vm1587, %v1564, 0
          %v1607 = vsel %vm1587, %v1565, 0
          %v1610 = vsel %vm1587, %v1566, 0
          %v1613 = vsel %vm1587, %v1567, 0
          %v1616 = vsel %vm1587, %v1568, 0
          %v1619 = vsel %vm1587, %v1569, 0
          %v1622 = vsel %vm1587, %v1570, 0
          %v1625 = vsel %vm1587, %v1571, 0
          %v1628 = vsel %vm1587, %v1572, 0
          %v1631 = vsel %vm1587, %v1573, 0
          %v1634 = vsel %vm1587, %v1574, 0
          %1636 = vmatpush.bf16.msra.mxu0 0
          %1637 = vmatpush.bf16.msra.mxu0 0
          %1638 = vmatpush.bf16.msra.mxu0 0
          %1639 = vmatpush.bf16.msra.mxu0 0
          %1640 = vmatpush.bf16.msra.mxu0 0
          %1641 = vmatpush.bf16.msra.mxu0 0
          %1642 = vmatpush.bf16.msra.mxu0 %v1584
          %1643 = vmatpush.bf16.msra.mxu0 %v1583
          %1644 = vmatmul.bf16.gmra.mxu0 %v1589
          %v1645 = vpop.f32.mrf.mxu0
          %v1646 = vadd.f32 0.0, %v1645
          %v1647 = vpop.f32.mrf.mxu0
          %v1648 = vadd.f32 0.0, %v1647
          %1649 = vmatmul.bf16.gmra.mxu0 %v1592
          %v1650 = vpop.f32.mrf.mxu0
          %v1651 = vadd.f32 0.0, %v1650
          %v1652 = vpop.f32.mrf.mxu0
          %v1653 = vadd.f32 0.0, %v1652
          %1654 = vmatmul.bf16.gmra.mxu0 %v1595
          %v1655 = vpop.f32.mrf.mxu0
          %v1656 = vadd.f32 0.0, %v1655
          %v1657 = vpop.f32.mrf.mxu0
          %v1658 = vadd.f32 0.0, %v1657
          %1659 = vmatmul.bf16.gmra.mxu0 %v1598
          %v1660 = vpop.f32.mrf.mxu0
          %v1661 = vadd.f32 0.0, %v1660
          %v1662 = vpop.f32.mrf.mxu0
          %v1663 = vadd.f32 0.0, %v1662
          %1664 = vmatmul.bf16.gmra.mxu0 %v1601
          %v1665 = vpop.f32.mrf.mxu0
          %v1666 = vadd.f32 0.0, %v1665
          %v1667 = vpop.f32.mrf.mxu0
          %v1668 = vadd.f32 0.0, %v1667
          %1669 = vmatmul.bf16.gmra.mxu0 %v1604
          %v1670 = vpop.f32.mrf.mxu0
          %v1671 = vadd.f32 0.0, %v1670
          %v1672 = vpop.f32.mrf.mxu0
          %v1673 = vadd.f32 0.0, %v1672
          %1674 = vmatmul.bf16.gmra.mxu0 %v1607
          %v1675 = vpop.f32.mrf.mxu0
          %v1676 = vadd.f32 0.0, %v1675
          %v1677 = vpop.f32.mrf.mxu0
          %v1678 = vadd.f32 0.0, %v1677
          %1679 = vmatmul.bf16.gmra.mxu0 %v1610
          %v1680 = vpop.f32.mrf.mxu0
          %v1681 = vadd.f32 0.0, %v1680
          %v1682 = vpop.f32.mrf.mxu0
          %v1683 = vadd.f32 0.0, %v1682
          %1684 = vmatmul.bf16.gmra.mxu0 %v1613
          %v1685 = vpop.f32.mrf.mxu0
          %v1686 = vadd.f32 0.0, %v1685
          %v1687 = vpop.f32.mrf.mxu0
          %v1688 = vadd.f32 0.0, %v1687
          %1689 = vmatmul.bf16.gmra.mxu0 %v1616
          %v1690 = vpop.f32.mrf.mxu0
          %v1691 = vadd.f32 0.0, %v1690
          %v1692 = vpop.f32.mrf.mxu0
          %v1693 = vadd.f32 0.0, %v1692
          %1694 = vmatmul.bf16.gmra.mxu0 %v1619
          %v1695 = vpop.f32.mrf.mxu0
          %v1696 = vadd.f32 0.0, %v1695
          %v1697 = vpop.f32.mrf.mxu0
          %v1698 = vadd.f32 0.0, %v1697
          %1699 = vmatmul.bf16.gmra.mxu0 %v1622
          %v1700 = vpop.f32.mrf.mxu0
          %v1701 = vadd.f32 0.0, %v1700
          %v1702 = vpop.f32.mrf.mxu0
          %v1703 = vadd.f32 0.0, %v1702
          %1704 = vmatmul.bf16.gmra.mxu0 %v1625
          %v1705 = vpop.f32.mrf.mxu0
          %v1706 = vadd.f32 0.0, %v1705
          %v1707 = vpop.f32.mrf.mxu0
          %v1708 = vadd.f32 0.0, %v1707
          %1709 = vmatmul.bf16.gmra.mxu0 %v1628
          %v1710 = vpop.f32.mrf.mxu0
          %v1711 = vadd.f32 0.0, %v1710
          %v1712 = vpop.f32.mrf.mxu0
          %v1713 = vadd.f32 0.0, %v1712
          %1714 = vmatmul.bf16.gmra.mxu0 %v1631
          %v1715 = vpop.f32.mrf.mxu0
          %v1716 = vadd.f32 0.0, %v1715
          %v1717 = vpop.f32.mrf.mxu0
          %v1718 = vadd.f32 0.0, %v1717
          %1719 = vmatmul.bf16.gmra.mxu0 %v1634
          %v1720 = vpop.f32.mrf.mxu0
          %v1721 = vadd.f32 0.0, %v1720
          %v1722 = vpop.f32.mrf.mxu0
          %v1723 = vadd.f32 0.0, %v1722
          %1724 = vdwg.mxu0
          %v1725 = vmul.f32 %v1646, %v486
          %v1726 = vmul.f32 %v1648, %v487
          %v1727 = vmul.f32 %v1651, %v488
          %v1728 = vmul.f32 %v1653, %v489
          %v1729 = vmul.f32 %v1656, %v490
          %v1730 = vmul.f32 %v1658, %v491
          %v1731 = vmul.f32 %v1661, %v492
          %v1732 = vmul.f32 %v1663, %v493
          %v1733 = vmul.f32 %v1666, %v494
          %v1734 = vmul.f32 %v1668, %v495
          %v1735 = vmul.f32 %v1671, %v496
          %v1736 = vmul.f32 %v1673, %v497
          %v1737 = vmul.f32 %v1676, %v498
          %v1738 = vmul.f32 %v1678, %v499
          %v1739 = vmul.f32 %v1681, %v500
          %v1740 = vmul.f32 %v1683, %v501
          %v1741 = vmul.f32 %v1686, %v502
          %v1742 = vmul.f32 %v1688, %v503
          %v1743 = vmul.f32 %v1691, %v504
          %v1744 = vmul.f32 %v1693, %v505
          %v1745 = vmul.f32 %v1696, %v506
          %v1746 = vmul.f32 %v1698, %v507
          %v1747 = vmul.f32 %v1701, %v508
          %v1748 = vmul.f32 %v1703, %v509
          %v1749 = vmul.f32 %v1706, %v510
          %v1750 = vmul.f32 %v1708, %v511
          %v1751 = vmul.f32 %v1711, %v512
          %v1752 = vmul.f32 %v1713, %v513
          %v1753 = vmul.f32 %v1716, %v514
          %v1754 = vmul.f32 %v1718, %v515
          %v1755 = vmul.f32 %v1721, %v516
          %v1756 = vmul.f32 %v1723, %v517
          %vm1757 = vcmask 130048
          %v1758 = vsel %vm1757, %v1725, 0.0
          %v1759 = vsel %vm1757, %v1726, 0.0
          %v1760 = vadd.f32 %v1758, %v1759
          %v1761 = vsel %vm1757, %v1727, 0.0
          %v1762 = vadd.f32 %v1760, %v1761
          %v1763 = vsel %vm1757, %v1728, 0.0
          %v1764 = vadd.f32 %v1762, %v1763
          %v1765 = vsel %vm1757, %v1729, 0.0
          %v1766 = vadd.f32 %v1764, %v1765
          %v1767 = vsel %vm1757, %v1730, 0.0
          %v1768 = vadd.f32 %v1766, %v1767
          %v1769 = vsel %vm1757, %v1731, 0.0
          %v1770 = vadd.f32 %v1768, %v1769
          %v1771 = vsel %vm1757, %v1732, 0.0
          %v1772 = vadd.f32 %v1770, %v1771
          %v1773 = vsel %vm1757, %v1733, 0.0
          %v1774 = vadd.f32 %v1772, %v1773
          %v1775 = vsel %vm1757, %v1734, 0.0
          %v1776 = vadd.f32 %v1774, %v1775
          %v1777 = vsel %vm1757, %v1735, 0.0
          %v1778 = vadd.f32 %v1776, %v1777
          %v1779 = vsel %vm1757, %v1736, 0.0
          %v1780 = vadd.f32 %v1778, %v1779
          %v1781 = vsel %vm1757, %v1737, 0.0
          %v1782 = vadd.f32 %v1780, %v1781
          %v1783 = vsel %vm1757, %v1738, 0.0
          %v1784 = vadd.f32 %v1782, %v1783
          %v1785 = vsel %vm1757, %v1739, 0.0
          %v1786 = vadd.f32 %v1784, %v1785
          %v1787 = vsel %vm1757, %v1740, 0.0
          %v1788 = vadd.f32 %v1786, %v1787
          %v1789 = vsel %vm1757, %v1741, 0.0
          %v1790 = vadd.f32 %v1788, %v1789
          %v1791 = vsel %vm1757, %v1742, 0.0
          %v1792 = vadd.f32 %v1790, %v1791
          %v1793 = vsel %vm1757, %v1743, 0.0
          %v1794 = vadd.f32 %v1792, %v1793
          %v1795 = vsel %vm1757, %v1744, 0.0
          %v1796 = vadd.f32 %v1794, %v1795
          %v1797 = vsel %vm1757, %v1745, 0.0
          %v1798 = vadd.f32 %v1796, %v1797
          %v1799 = vsel %vm1757, %v1746, 0.0
          %v1800 = vadd.f32 %v1798, %v1799
          %v1801 = vsel %vm1757, %v1747, 0.0
          %v1802 = vadd.f32 %v1800, %v1801
          %v1803 = vsel %vm1757, %v1748, 0.0
          %v1804 = vadd.f32 %v1802, %v1803
          %v1805 = vsel %vm1757, %v1749, 0.0
          %v1806 = vadd.f32 %v1804, %v1805
          %v1807 = vsel %vm1757, %v1750, 0.0
          %v1808 = vadd.f32 %v1806, %v1807
          %v1809 = vsel %vm1757, %v1751, 0.0
          %v1810 = vadd.f32 %v1808, %v1809
          %v1811 = vsel %vm1757, %v1752, 0.0
          %v1812 = vadd.f32 %v1810, %v1811
          %v1813 = vsel %vm1757, %v1753, 0.0
          %v1814 = vadd.f32 %v1812, %v1813
          %v1815 = vsel %vm1757, %v1754, 0.0
          %v1816 = vadd.f32 %v1814, %v1815
          %v1817 = vsel %vm1757, %v1755, 0.0
          %v1818 = vadd.f32 %v1816, %v1817
          %v1819 = vsel %vm1757, %v1756, 0.0
          %v1820 = vadd.f32 %v1818, %v1819
          %v1821 = vrot.slane %v1820, 4
          %v1822 = vadd.f32 %v1820, %v1821
          %v1823 = vrot.slane %v1822, 2
          %v1824 = vadd.f32 %v1822, %v1823
          %v1825 = vrot.slane %v1824, 1
          %v1826 = vadd.f32 %v1824, %v1825
          %v1827 = vmul.f32 %v1725, %v1646
          %v1828 = vmul.f32 %v1726, %v1648
          %v1829 = vmul.f32 %v1727, %v1651
          %v1830 = vmul.f32 %v1728, %v1653
          %v1831 = vmul.f32 %v1729, %v1656
          %v1832 = vmul.f32 %v1730, %v1658
          %v1833 = vmul.f32 %v1731, %v1661
          %v1834 = vmul.f32 %v1732, %v1663
          %v1835 = vmul.f32 %v1733, %v1666
          %v1836 = vmul.f32 %v1734, %v1668
          %v1837 = vmul.f32 %v1735, %v1671
          %v1838 = vmul.f32 %v1736, %v1673
          %v1839 = vmul.f32 %v1737, %v1676
          %v1840 = vmul.f32 %v1738, %v1678
          %v1841 = vmul.f32 %v1739, %v1681
          %v1842 = vmul.f32 %v1740, %v1683
          %v1843 = vmul.f32 %v1741, %v1686
          %v1844 = vmul.f32 %v1742, %v1688
          %v1845 = vmul.f32 %v1743, %v1691
          %v1846 = vmul.f32 %v1744, %v1693
          %v1847 = vmul.f32 %v1745, %v1696
          %v1848 = vmul.f32 %v1746, %v1698
          %v1849 = vmul.f32 %v1747, %v1701
          %v1850 = vmul.f32 %v1748, %v1703
          %v1851 = vmul.f32 %v1749, %v1706
          %v1852 = vmul.f32 %v1750, %v1708
          %v1853 = vmul.f32 %v1751, %v1711
          %v1854 = vmul.f32 %v1752, %v1713
          %v1855 = vmul.f32 %v1753, %v1716
          %v1856 = vmul.f32 %v1754, %v1718
          %v1857 = vmul.f32 %v1755, %v1721
          %v1858 = vmul.f32 %v1756, %v1723
          %v1859 = vsel %vm1757, %v1827, 0.0
          %v1860 = vsel %vm1757, %v1828, 0.0
          %v1861 = vadd.f32 %v1859, %v1860
          %v1862 = vsel %vm1757, %v1829, 0.0
          %v1863 = vadd.f32 %v1861, %v1862
          %v1864 = vsel %vm1757, %v1830, 0.0
          %v1865 = vadd.f32 %v1863, %v1864
          %v1866 = vsel %vm1757, %v1831, 0.0
          %v1867 = vadd.f32 %v1865, %v1866
          %v1868 = vsel %vm1757, %v1832, 0.0
          %v1869 = vadd.f32 %v1867, %v1868
          %v1870 = vsel %vm1757, %v1833, 0.0
          %v1871 = vadd.f32 %v1869, %v1870
          %v1872 = vsel %vm1757, %v1834, 0.0
          %v1873 = vadd.f32 %v1871, %v1872
          %v1874 = vsel %vm1757, %v1835, 0.0
          %v1875 = vadd.f32 %v1873, %v1874
          %v1876 = vsel %vm1757, %v1836, 0.0
          %v1877 = vadd.f32 %v1875, %v1876
          %v1878 = vsel %vm1757, %v1837, 0.0
          %v1879 = vadd.f32 %v1877, %v1878
          %v1880 = vsel %vm1757, %v1838, 0.0
          %v1881 = vadd.f32 %v1879, %v1880
          %v1882 = vsel %vm1757, %v1839, 0.0
          %v1883 = vadd.f32 %v1881, %v1882
          %v1884 = vsel %vm1757, %v1840, 0.0
          %v1885 = vadd.f32 %v1883, %v1884
          %v1886 = vsel %vm1757, %v1841, 0.0
          %v1887 = vadd.f32 %v1885, %v1886
          %v1888 = vsel %vm1757, %v1842, 0.0
          %v1889 = vadd.f32 %v1887, %v1888
          %v1890 = vsel %vm1757, %v1843, 0.0
          %v1891 = vadd.f32 %v1889, %v1890
          %v1892 = vsel %vm1757, %v1844, 0.0
          %v1893 = vadd.f32 %v1891, %v1892
          %v1894 = vsel %vm1757, %v1845, 0.0
          %v1895 = vadd.f32 %v1893, %v1894
          %v1896 = vsel %vm1757, %v1846, 0.0
          %v1897 = vadd.f32 %v1895, %v1896
          %v1898 = vsel %vm1757, %v1847, 0.0
          %v1899 = vadd.f32 %v1897, %v1898
          %v1900 = vsel %vm1757, %v1848, 0.0
          %v1901 = vadd.f32 %v1899, %v1900
          %v1902 = vsel %vm1757, %v1849, 0.0
          %v1903 = vadd.f32 %v1901, %v1902
          %v1904 = vsel %vm1757, %v1850, 0.0
          %v1905 = vadd.f32 %v1903, %v1904
          %v1906 = vsel %vm1757, %v1851, 0.0
          %v1907 = vadd.f32 %v1905, %v1906
          %v1908 = vsel %vm1757, %v1852, 0.0
          %v1909 = vadd.f32 %v1907, %v1908
          %v1910 = vsel %vm1757, %v1853, 0.0
          %v1911 = vadd.f32 %v1909, %v1910
          %v1912 = vsel %vm1757, %v1854, 0.0
          %v1913 = vadd.f32 %v1911, %v1912
          %v1914 = vsel %vm1757, %v1855, 0.0
          %v1915 = vadd.f32 %v1913, %v1914
          %v1916 = vsel %vm1757, %v1856, 0.0
          %v1917 = vadd.f32 %v1915, %v1916
          %v1918 = vsel %vm1757, %v1857, 0.0
          %v1919 = vadd.f32 %v1917, %v1918
          %v1920 = vsel %vm1757, %v1858, 0.0
          %v1921 = vadd.f32 %v1919, %v1920
          %v1922 = vrot.slane %v1921, 4
          %v1923 = vadd.f32 %v1921, %v1922
          %v1924 = vrot.slane %v1923, 2
          %v1925 = vadd.f32 %v1923, %v1924
          %v1926 = vrot.slane %v1925, 1
          %v1927 = vadd.f32 %v1925, %v1926
          %p1928 = scmp.eq.s32.totalorder %s30, 0
          // Predicated region
          $region73: #{tpu_custom_call.1} parent=71 // pred_check
            %p1929 = pneg %p1928
          $region74: #{tpu_custom_call.1} parent=71 // pred_check_branch
            %1931 = sbr.rel (%p1929) target = $region76
          $region75: #{tpu_custom_call.1} parent=71 // pred_region
            %vm1932 = vcmask 122880
            %1933 = vst.msk [vmem:[#allocation5] sm:$0x1] %vm1932, %v1826
            %1934 = vst.msk [vmem:[#allocation6] sm:$0x1] %vm1932, %v1927
          $region76: #{tpu_custom_call.1} parent=71 // pred_fallthru
            _
          %p1935 = scmp.gt.s32.totalorder %s30, 0
          // Predicated region
          $region77: #{tpu_custom_call.1} parent=71 // pred_check
            %p1936 = pneg %p1935
          $region78: #{tpu_custom_call.1} parent=71 // pred_check_branch
            %1938 = sbr.rel (%p1936) target = $region80
          $region79: #{tpu_custom_call.1} parent=71 // pred_region
            %v1939 = vld [vmem:[#allocation5] sm:$0x1]
            %v1940 = vadd.f32 %v1939, %v1826
            %vm1941 = vcmask 122880
            %1942 = vst.msk [vmem:[#allocation5] sm:$0x1] %vm1941, %v1940
            %v1943 = vld [vmem:[#allocation6] sm:$0x1]
            %v1944 = vadd.f32 %v1943, %v1927
            %1945 = vst.msk [vmem:[#allocation6] sm:$0x1] %vm1941, %v1944
          $region80: #{tpu_custom_call.1} parent=71 // pred_fallthru
            _
          // Predicated region
          $region81: #{tpu_custom_call.1} parent=71 // pred_check
            %p1946 = pneg %p1928
          $region82: #{tpu_custom_call.1} parent=71 // pred_check_branch
            %1948 = sbr.rel (%p1946) target = $region84
          $region83: #{tpu_custom_call.1} parent=71 // pred_region
            %v1949 = vld [vmem:[#allocation5] sm:$0x1]
            %v1950 = vmul.f32 %v1949, 0.00390625
            %v1951 = vld [vmem:[#allocation6] sm:$0x1]
            %v1952 = vmul.f32 %v1951, 0.00390625
            %v1953 = vmul.f32 %v1950, %v1950
            %v1954 = vsub.f32 %v1952, %v1953
            %v1955 = vmax.f32 %v1954, 0.0
            %v1956 = vadd.f32 %v1955, 1e-05
            %v1957 = vrsqrt.pop %v1956
            %v1958 = vmul.f32 %v1957, %v1956
            %v1959 = vmul.f32 %v1958, %v1957
            %v1960 = vmul.f32 0.5, %v1959
            %v1961 = vsub.f32 1.5, %v1960
            %v1962 = vmul.f32 %v1957, %v1961
            %vm1963 = vweird.f32 %v1956
            %vm1964 = vweird.f32 %v1957
            %vm1965 = vmor %vm1963, %vm1964
            %v1966 = vsel %vm1965, %v1957, %v1962
            %v1967 = vld [vmem:[%s4] sm:$0x1]
            %v1968 = vmul.f32 %v1967, %v1966
            %vm1969 = vcmask 122880
            %1970 = vst.msk [vmem:[#allocation9] sm:$0x1] %vm1969, %v1968
            %v1971 = vld [vmem:[%s6] sm:$0x1]
            %v1972 = vmul.f32 %v1950, %v1968
            %v1973 = vsub.f32 %v1971, %v1972
            %1974 = vst.msk [vmem:[#allocation12] sm:$0x1] %vm1969, %v1973
          $region84: #{tpu_custom_call.1} parent=71 // pred_fallthru
            _
        $region72: #{tpu_custom_call.1} parent=47 // pred_fallthru
          _
        // Predicated region
        $region85: #{tpu_custom_call.1} parent=47 // pred_check
          %p1975 = pneg %p202
        $region86: #{tpu_custom_call.1} parent=47 // pred_check_branch
          %1977 = sbr.rel (%p1975) target = $region88
        $region87: #{tpu_custom_call.1} parent=47 // pred_region
          %1979 = vsyncadd [#allocation8], 0
          %s1981 = sshll.u32 [#allocation7], 4
          %s1982 = int_to_ptr.vmem [resolvable:$true] %s1981
          %s1983 = sshll.u32 %s7, 4
          %s1984 = int_to_ptr.hbm [resolvable:$true] %s1983
          %1986 = dma.vmem_to_hbm [thread:$0]  %s1982, 16, %s1984, [#allocation8]
        $region88: #{tpu_custom_call.1} parent=47 // pred_fallthru
          _
        // Predicated region
        $region89: #{tpu_custom_call.1} parent=47 // pred_check
          %p1987 = pneg %p223
        $region90: #{tpu_custom_call.1} parent=47 // pred_check_branch
          %1989 = sbr.rel (%p1987) target = $region92
        $region91: #{tpu_custom_call.1} parent=47 // pred_region
          %1991 = vsyncadd [#allocation10], 0
          %s1993 = sshll.u32 [#allocation9], 4
          %s1994 = int_to_ptr.vmem [resolvable:$true] %s1993
          %s1995 = sshll.u32 %s8, 4
          %s1996 = int_to_ptr.hbm [resolvable:$true] %s1995
          %1998 = dma.vmem_to_hbm [thread:$0]  %s1994, 16, %s1996, [#allocation10]
        $region92: #{tpu_custom_call.1} parent=47 // pred_fallthru
          _
        // Predicated region
        $region93: #{tpu_custom_call.1} parent=47 // pred_check
          %p1999 = pneg %p244
        $region94: #{tpu_custom_call.1} parent=47 // pred_check_branch
          %2001 = sbr.rel (%p1999) target = $region96
        $region95: #{tpu_custom_call.1} parent=47 // pred_region
          %2003 = vsyncadd [#allocation10], 0
          %s2005 = sshll.u32 [#allocation11], 4
          %s2006 = int_to_ptr.vmem [resolvable:$true] %s2005
          %s2007 = sshll.u32 %s9, 4
          %s2008 = int_to_ptr.hbm [resolvable:$true] %s2007
          %2010 = dma.vmem_to_hbm [thread:$0]  %s2006, 16, %s2008, [#allocation10]
        $region96: #{tpu_custom_call.1} parent=47 // pred_fallthru
          _
        // Predicated region
        $region97: #{tpu_custom_call.1} parent=47 // pred_check
          %p2011 = pneg %p265
        $region98: #{tpu_custom_call.1} parent=47 // pred_check_branch
          %2013 = sbr.rel (%p2011) target = $region100
        $region99: #{tpu_custom_call.1} parent=47 // pred_region
          %2015 = vsyncadd [#allocation13], 0
          %s2017 = sshll.u32 [#allocation12], 4
          %s2018 = int_to_ptr.vmem [resolvable:$true] %s2017
          %s2019 = sshll.u32 %s10, 4
          %s2020 = int_to_ptr.hbm [resolvable:$true] %s2019
          %2022 = dma.vmem_to_hbm [thread:$0]  %s2018, 16, %s2020, [#allocation13]
        $region100: #{tpu_custom_call.1} parent=47 // pred_fallthru
          _
        // Predicated region
        $region101: #{tpu_custom_call.1} parent=47 // pred_check
          %p2023 = pneg %p202
        $region102: #{tpu_custom_call.1} parent=47 // pred_check_branch
          %2025 = sbr.rel (%p2023) target = $region104
        $region103: #{tpu_custom_call.1} parent=47 // pred_region
          %2027 = dma.done [#allocation8], 16
        $region104: #{tpu_custom_call.1} parent=47 // pred_fallthru
          _
        // Predicated region
        $region105: #{tpu_custom_call.1} parent=47 // pred_check
          %p2028 = pneg %p223
        $region106: #{tpu_custom_call.1} parent=47 // pred_check_branch
          %2030 = sbr.rel (%p2028) target = $region108
        $region107: #{tpu_custom_call.1} parent=47 // pred_region
          %2032 = dma.done [#allocation10], 16
        $region108: #{tpu_custom_call.1} parent=47 // pred_fallthru
          _
        // Predicated region
        $region109: #{tpu_custom_call.1} parent=47 // pred_check
          %p2033 = pneg %p244
        $region110: #{tpu_custom_call.1} parent=47 // pred_check_branch
          %2035 = sbr.rel (%p2033) target = $region112
        $region111: #{tpu_custom_call.1} parent=47 // pred_region
          %2037 = dma.done [#allocation10], 16
        $region112: #{tpu_custom_call.1} parent=47 // pred_fallthru
          _
        // Predicated region
        $region113: #{tpu_custom_call.1} parent=47 // pred_check
          %p2038 = pneg %p265
        $region114: #{tpu_custom_call.1} parent=47 // pred_check_branch
          %2040 = sbr.rel (%p2038) target = $region116
        $region115: #{tpu_custom_call.1} parent=47 // pred_region
          %2042 = dma.done [#allocation13], 16
        $region116: #{tpu_custom_call.1} parent=47 // pred_fallthru
          _
      $region48: #{tpu_custom_call.1} parent=5 // pred_fallthru
        _
      %p2043 = scmp.le.s32.totalorder 2, %s20
      // Predicated region
      $region117: #{tpu_custom_call.1} parent=5 // pred_check
        %p2044 = pneg %p2043
      $region118: #{tpu_custom_call.1} parent=5 // pred_check_branch
        %2046 = sbr.rel (%p2044) target = $region120
      $region119: #{tpu_custom_call.1} parent=5 // pred_region
        %s2047 = ssub.s32 %s20, 2
      $region120: #{tpu_custom_call.1} parent=5 // pred_fallthru
        _
    $region6: #{tpu_custom_call.1} parent=1 // loop_footer
      %s24 = sadd.s32 1, %s20
    $region7: #{tpu_custom_call.1} parent=1 // loop_footer_branch
      %19 = sbr.rel target = $region3
    $region8: #{tpu_custom_call.1} parent=1 // loop_exit
      _
    %2048 = vsyncpa [#allocation8], 1
    %s2049 = scalar_lea.sflag [#allocation8], 1
    %2050 = vsyncpa %s2049, 1
    %2051 = vsyncpa [#allocation10], 1
    %2052 = vsyncpa [#allocation13], 1

</llo_original>
